<compile_context>
chip_gen: v6e
topology: v6e:2x2x1
jax: 0.10.0
libtpu: 0.0.40
codegen_flags: <defaults>
</compile_context>

<pallas_src>
import jax
import jax.numpy as jnp
import numpy as np
from jax.experimental import pallas as pl
from jax.experimental.pallas import tpu as pltpu

# Small stand-in dimensions consistent with the module's structure.
# (original: IN = 224*224*3 = 150528, HIDDEN = 1000, OUT = 1)
BATCH = 2
IN_FEATURES = 1024       # stand-in for 150528 (K-tiled the same way)
K_TILE = 256             # stand-in reduction tile -> 4 grid steps
HIDDEN = 256             # stand-in for 1000 (pad to 1024 at real dims)
OUT_FEATURES = 1
OUT_PAD = 128            # lane-dense padded output width
SUBLANE_BF16 = 16        # bf16 sublane packing -> pad batch to a multiple of 16

assert IN_FEATURES % K_TILE == 0
assert HIDDEN % 128 == 0 and OUT_PAD <= HIDDEN


def _model_kernel(x_ref, w1_ref, wh_ref, w8_ref, b_ref, out_ref, acc_ref):
    k = pl.program_id(0)
    nk = pl.num_programs(0)

    @pl.when(k == 0)
    def _init():
        acc_ref[...] = jnp.zeros_like(acc_ref)

    # fc1 partial: (B_PAD, K_TILE) bf16 x (K_TILE, HIDDEN) bf16 -> f32 accumulate.
    acc_ref[...] += jnp.dot(x_ref[...], w1_ref[...],
                            preferred_element_type=jnp.float32)

    @pl.when(k == nk - 1)
    def _finalize():
        def dot_bf16(a, w):
            # bf16 x bf16 on the MXU, f32 accumulation.
            return jnp.dot(a.astype(jnp.bfloat16), w,
                           preferred_element_type=jnp.float32)

        b = b_ref[...]                                        # (7, HIDDEN) f32
        v1 = acc_ref[...] + b[0:1, :]                         # fc1
        v3 = dot_bf16(v1, wh_ref[0]) + b[1:2, :]              # fc2
        v6 = jnp.tanh(v1 * 0.7978845608028654 + 1.0)
        v7 = v3 * v6
        # fc3(v7) and v1*0.5 are dead in the reference graph: never computed,
        # and fc3's weights are never transferred.
        v10 = v7 * (v7 * 0.044715)
        v11 = dot_bf16(v10, wh_ref[1]) + b[2:3, :]            # fc4
        v12 = v10 * v11
        v13 = dot_bf16(v12, wh_ref[2]) + b[3:4, :]            # fc5
        v14 = v12 * v13
        v15 = dot_bf16(v14, wh_ref[3]) + b[4:5, :]            # fc6
        v16 = v14 * v15
        v17 = dot_bf16(v16, wh_ref[4]) + b[5:6, :]            # fc7
        v18 = v16 * v17
        v19 = dot_bf16(v18, w8_ref[...]) + b[6:7, 0:OUT_PAD]  # fc8 (lane-padded)
        out_ref[...] = v19.astype(out_ref.dtype)


def pack_params(params):
    """Coalesce the per-layer (W, b) pairs into 4 kernel-friendly arrays."""
    w1 = params[0][0].astype(jnp.bfloat16)                   # (IN, HIDDEN)
    # Hidden (HIDDEN, HIDDEN) layers actually used: fc2, fc4, fc5, fc6, fc7.
    wh = jnp.stack([params[i][0].astype(jnp.bfloat16) for i in (1, 3, 4, 5, 6)],
                   axis=0)                                    # (5, HIDDEN, HIDDEN)
    w8 = params[7][0].astype(jnp.bfloat16)                    # (HIDDEN, 1)
    w8_pad = jnp.zeros((HIDDEN, OUT_PAD), jnp.bfloat16).at[:, :OUT_FEATURES].set(w8)

    b_rows = [params[i][1].reshape(-1) for i in (0, 1, 3, 4, 5, 6)]
    b8 = params[7][1].reshape(-1)
    # fc8's bias lives in columns [0, OUT_FEATURES) of row 6; requires
    # OUT_FEATURES <= OUT_PAD <= HIDDEN (asserted at module scope).
    b8_row = jnp.zeros((HIDDEN,), jnp.float32).at[:OUT_FEATURES].set(b8)
    b_all = jnp.stack(b_rows + [b8_row], axis=0)              # (7, HIDDEN) f32
    return w1, wh, w8_pad, b_all


def model_forward(x, packed):
    """x: (B, IN_FEATURES) f32; packed: (w1, w_hid, w8_pad, b_all)."""
    w1, wh, w8_pad, b_all = packed
    B = x.shape[0]
    b_pad = max(SUBLANE_BF16,
                ((B + SUBLANE_BF16 - 1) // SUBLANE_BF16) * SUBLANE_BF16)
    # Cast x to bf16 in the wrapper: halves the x DMA and removes an in-kernel cast.
    x_pad = jnp.zeros((b_pad, IN_FEATURES), jnp.bfloat16).at[:B, :].set(
        x.astype(jnp.bfloat16))

    nk = IN_FEATURES // K_TILE

    def resident_spec(arr):
        # Full-array block whose index_map ignores k -> DMA'd once, stays resident.
        nd = arr.ndim
        return pl.BlockSpec(arr.shape, lambda k, _nd=nd: (0,) * _nd)

    in_specs = [
        pl.BlockSpec((b_pad, K_TILE), lambda k: (0, k)),      # x, streamed along K
        pl.BlockSpec((K_TILE, HIDDEN), lambda k: (k, 0)),     # w1, streamed along K
        resident_spec(wh),                                    # hidden weights
        resident_spec(w8_pad),                                # fc8 weight (padded)
        resident_spec(b_all),                                 # biases
    ]
    # Output block index is constant across k -> resident accumulator output,
    # written only on the last reduction step, flushed to HBM once.
    out_spec = pl.BlockSpec((b_pad, OUT_PAD), lambda k: (0, 0))
    out_shape = jax.ShapeDtypeStruct((b_pad, OUT_PAD), jnp.float32)

    out = pl.pallas_call(
        _model_kernel,
        out_shape=out_shape,
        grid_spec=pltpu.PrefetchScalarGridSpec(
            num_scalar_prefetch=0,
            grid=(nk,),
            in_specs=in_specs,
            out_specs=out_spec,
            scratch_shapes=[pltpu.VMEM((b_pad, HIDDEN), jnp.float32)],
        ),
        compiler_params=pltpu.CompilerParams(
            dimension_semantics=("arbitrary",),   # reduction axis
            vmem_limit_bytes=32 << 20,            # headroom for resident weights
        ),
    )(x_pad, w1, wh, w8_pad, b_all)

    return out[:B, :OUT_FEATURES]


def init_params(key):
    """Deterministic init mimicking PyTorch Linear default U(-1/sqrt(in), 1/sqrt(in)).
    Weights stored pre-transposed as (in, out); returned in f32 (the packer
    casts to bf16 so kernel and reference see numerically identical weights)."""
    dims = [(IN_FEATURES, HIDDEN)] + [(HIDDEN, HIDDEN)] * 6 + [(HIDDEN, OUT_FEATURES)]
    params = []
    for (din, dout) in dims:
        key, kw, kb = jax.random.split(key, 3)
        bound = 1.0 / np.sqrt(din)
        w = jax.random.uniform(kw, (din, dout), jnp.float32, -bound, bound)
        b = jax.random.uniform(kb, (1, dout), jnp.float32, -bound, bound)
        params.append((w, b))
    return params


def reference_forward(x, params):
    """Pure-JAX f32 reference of the PyTorch graph.  Uses the same bf16-rounded
    weights (and bf16-rounded x for fc1) the kernel sees, so the remaining
    difference is only the kernel's bf16 activation casts at each MXU input."""
    def linear(v, wb):
        w, b = wb
        return v @ w.astype(jnp.bfloat16).astype(jnp.float32) + b
    x_r = x.astype(jnp.bfloat16).astype(jnp.float32)
    v1 = linear(x_r, params[0])
    v3 = linear(v1, params[1])
    v6 = jnp.tanh(v1 * 0.7978845608028654 + 1.0)
    v7 = v3 * v6
    v10 = v7 * (v7 * 0.044715)
    v11 = linear(v10, params[3])
    v12 = v10 * v11
    v13 = linear(v12, params[4])
    v14 = v12 * v13
    v15 = linear(v14, params[5])
    v16 = v14 * v15
    v17 = linear(v16, params[6])
    v18 = v16 * v17
    return linear(v18, params[7])


if __name__ == "__main__":
    key = jax.random.PRNGKey(0)
    key, kx = jax.random.split(key)
    x = jax.random.normal(kx, (BATCH, IN_FEATURES), jnp.float32)
    params = init_params(key)
    packed = pack_params(params)

    out = model_forward(x, packed)
    out = jax.block_until_ready(out)

    ref = reference_forward(x, params)
    # bf16 activation casts at the MXU inputs -> relaxed tolerance vs f32 ref.
    np.testing.assert_allclose(np.asarray(out), np.asarray(ref), rtol=2e-2, atol=1e-3)

    print("KERNEL_OK")
</pallas_src>

<mosaic_0001>
module attributes {stable_mosaic.version = 11 : i64} {
  func.func @_model_kernel(%arg0: i32, %arg1: memref<16x256xbf16, #tpu.memory_space<vmem>>, %arg2: memref<256x256xbf16, #tpu.memory_space<vmem>>, %arg3: memref<5x256x256xbf16, #tpu.memory_space<vmem>>, %arg4: memref<256x128xbf16, #tpu.memory_space<vmem>>, %arg5: memref<7x256xf32, #tpu.memory_space<vmem>>, %arg6: memref<16x128xf32, #tpu.memory_space<vmem>>, %arg7: memref<16x256xf32, #tpu.memory_space<vmem>>) attributes {dimension_semantics = [#tpu.dimension_semantics<arbitrary>], iteration_bounds = array<i64: 4>, scalar_prefetch = 0 : i64, scratch_operands = 1 : i64, tpu.core_type = #tpu.core_type<tc>, window_params = [{transform_indices = @transform_0, window_bounds = array<i64: 16, 256>}, {transform_indices = @transform_1, window_bounds = array<i64: 256, 256>}, {pipeline_mode = #tpu.pipeline_mode<synchronous>, transform_indices = @transform_2, window_bounds = array<i64: 5, 256, 256>}, {pipeline_mode = #tpu.pipeline_mode<synchronous>, transform_indices = @transform_3, window_bounds = array<i64: 256, 128>}, {pipeline_mode = #tpu.pipeline_mode<synchronous>, transform_indices = @transform_4, window_bounds = array<i64: 7, 256>}, {pipeline_mode = #tpu.pipeline_mode<synchronous>, transform_indices = @transform_5, window_bounds = array<i64: 16, 128>}]} {
    %c0_i32 = arith.constant 0 : i32
    %0 = arith.cmpi eq, %arg0, %c0_i32 : i32
    %1 = arith.extui %0 : i1 to i32
    %c0_i32_0 = arith.constant 0 : i32
    %2 = arith.cmpi ne, %1, %c0_i32_0 : i32
    scf.if %2 {
      %cst_9 = arith.constant 0.000000e+00 : f32
      %12 = vector.broadcast %cst_9 : f32 to vector<16x256xf32>
      %c0_10 = arith.constant 0 : index
      %c0_11 = arith.constant 0 : index
      %13 = vector.load %arg7[%c0_10, %c0_11] : memref<16x256xf32, #tpu.memory_space<vmem>>, vector<16x256xf32>
      tpu.vector_store %arg7[%c0_10, %c0_11], %12 {strides = array<i32>} : memref<16x256xf32, #tpu.memory_space<vmem>>, vector<16x256xf32>,
    } else {
    }
    %c0 = arith.constant 0 : index
    %c0_1 = arith.constant 0 : index
    %3 = vector.load %arg7[%c0, %c0_1] : memref<16x256xf32, #tpu.memory_space<vmem>>, vector<16x256xf32>
    %c0_2 = arith.constant 0 : index
    %c0_3 = arith.constant 0 : index
    %4 = vector.load %arg1[%c0_2, %c0_3] : memref<16x256xbf16, #tpu.memory_space<vmem>>, vector<16x256xbf16>
    %c0_4 = arith.constant 0 : index
    %c0_5 = arith.constant 0 : index
    %5 = vector.load %arg2[%c0_4, %c0_5] : memref<256x256xbf16, #tpu.memory_space<vmem>>, vector<256x256xbf16>
    %cst = arith.constant dense<0.000000e+00> : vector<16x256xf32>
    %6 = tpu.matmul %4, %5, %cst {dimension_numbers = #tpu.dot_dimension_numbers<[1], [0], [0], [1], [0, 0, 1, 1], [], []>} : vector<16x256xbf16>, vector<256x256xbf16>, vector<16x256xf32> -> vector<16x256xf32>
    %7 = arith.addf %3, %6 : vector<16x256xf32>
    %c0_6 = arith.constant 0 : index
    %c0_7 = arith.constant 0 : index
    %8 = vector.load %arg7[%c0_6, %c0_7] : memref<16x256xf32, #tpu.memory_space<vmem>>, vector<16x256xf32>
    tpu.vector_store %arg7[%c0_6, %c0_7], %7 {strides = array<i32>} : memref<16x256xf32, #tpu.memory_space<vmem>>, vector<16x256xf32>,
    %c3_i32 = arith.constant 3 : i32
    %9 = arith.cmpi eq, %arg0, %c3_i32 : i32
    %10 = arith.extui %9 : i1 to i32
    %c0_i32_8 = arith.constant 0 : i32
    %11 = arith.cmpi ne, %10, %c0_i32_8 : i32
    scf.if %11 {
      %c0_9 = arith.constant 0 : index
      %c0_10 = arith.constant 0 : index
      %12 = vector.load %arg5[%c0_9, %c0_10] : memref<7x256xf32, #tpu.memory_space<vmem>>, vector<7x256xf32>
      %c0_11 = arith.constant 0 : index
      %c0_12 = arith.constant 0 : index
      %13 = vector.load %arg7[%c0_11, %c0_12] : memref<16x256xf32, #tpu.memory_space<vmem>>, vector<16x256xf32>
      %14 = vector.extract_strided_slice %12 {offsets = [0, 0], sizes = [1, 256], strides = [1, 1]} : vector<7x256xf32> to vector<1x256xf32>
      %15 = vector.broadcast %14 : vector<1x256xf32> to vector<16x256xf32>
      %16 = arith.addf %13, %15 : vector<16x256xf32>
      %c0_13 = arith.constant 0 : index
      %c0_14 = arith.constant 0 : index
      %c0_15 = arith.constant 0 : index
      %17 = vector.load %arg3[%c0_13, %c0_14, %c0_15] : memref<5x256x256xbf16, #tpu.memory_space<vmem>>, vector<1x256x256xbf16>
      %18 = vector.shape_cast %17 : vector<1x256x256xbf16> to vector<256x256xbf16>
      %19 = arith.truncf %16 : vector<16x256xf32> to vector<16x256xbf16>
      %cst_16 = arith.constant dense<0.000000e+00> : vector<16x256xf32>
      %20 = tpu.matmul %19, %18, %cst_16 {dimension_numbers = #tpu.dot_dimension_numbers<[1], [0], [0], [1], [0, 0, 1, 1], [], []>} : vector<16x256xbf16>, vector<256x256xbf16>, vector<16x256xf32> -> vector<16x256xf32>
      %21 = vector.extract_strided_slice %12 {offsets = [1, 0], sizes = [1, 256], strides = [1, 1]} : vector<7x256xf32> to vector<1x256xf32>
      %22 = vector.broadcast %21 : vector<1x256xf32> to vector<16x256xf32>
      %23 = arith.addf %20, %22 : vector<16x256xf32>
      %cst_17 = arith.constant 0.797884583 : f32
      %24 = vector.broadcast %cst_17 : f32 to vector<16x256xf32>
      %25 = arith.mulf %16, %24 : vector<16x256xf32>
      %cst_18 = arith.constant 1.000000e+00 : f32
      %26 = vector.broadcast %cst_18 : f32 to vector<16x256xf32>
      %27 = arith.addf %25, %26 : vector<16x256xf32>
      %28 = math.tanh %27 : vector<16x256xf32>
      %29 = arith.mulf %23, %28 : vector<16x256xf32>
      %cst_19 = arith.constant 4.471500e-02 : f32
      %30 = vector.broadcast %cst_19 : f32 to vector<16x256xf32>
      %31 = arith.mulf %29, %30 : vector<16x256xf32>
      %32 = arith.mulf %29, %31 : vector<16x256xf32>
      %c1 = arith.constant 1 : index
      %c0_20 = arith.constant 0 : index
      %c0_21 = arith.constant 0 : index
      %33 = vector.load %arg3[%c1, %c0_20, %c0_21] : memref<5x256x256xbf16, #tpu.memory_space<vmem>>, vector<1x256x256xbf16>
      %34 = vector.shape_cast %33 : vector<1x256x256xbf16> to vector<256x256xbf16>
      %35 = arith.truncf %32 : vector<16x256xf32> to vector<16x256xbf16>
      %cst_22 = arith.constant dense<0.000000e+00> : vector<16x256xf32>
      %36 = tpu.matmul %35, %34, %cst_22 {dimension_numbers = #tpu.dot_dimension_numbers<[1], [0], [0], [1], [0, 0, 1, 1], [], []>} : vector<16x256xbf16>, vector<256x256xbf16>, vector<16x256xf32> -> vector<16x256xf32>
      %37 = vector.extract_strided_slice %12 {offsets = [2, 0], sizes = [1, 256], strides = [1, 1]} : vector<7x256xf32> to vector<1x256xf32>
      %38 = vector.broadcast %37 : vector<1x256xf32> to vector<16x256xf32>
      %39 = arith.addf %36, %38 : vector<16x256xf32>
      %40 = arith.mulf %32, %39 : vector<16x256xf32>
      %c2 = arith.constant 2 : index
      %c0_23 = arith.constant 0 : index
      %c0_24 = arith.constant 0 : index
      %41 = vector.load %arg3[%c2, %c0_23, %c0_24] : memref<5x256x256xbf16, #tpu.memory_space<vmem>>, vector<1x256x256xbf16>
      %42 = vector.shape_cast %41 : vector<1x256x256xbf16> to vector<256x256xbf16>
      %43 = arith.truncf %40 : vector<16x256xf32> to vector<16x256xbf16>
      %cst_25 = arith.constant dense<0.000000e+00> : vector<16x256xf32>
      %44 = tpu.matmul %43, %42, %cst_25 {dimension_numbers = #tpu.dot_dimension_numbers<[1], [0], [0], [1], [0, 0, 1, 1], [], []>} : vector<16x256xbf16>, vector<256x256xbf16>, vector<16x256xf32> -> vector<16x256xf32>
      %45 = vector.extract_strided_slice %12 {offsets = [3, 0], sizes = [1, 256], strides = [1, 1]} : vector<7x256xf32> to vector<1x256xf32>
      %46 = vector.broadcast %45 : vector<1x256xf32> to vector<16x256xf32>
      %47 = arith.addf %44, %46 : vector<16x256xf32>
      %48 = arith.mulf %40, %47 : vector<16x256xf32>
      %c3 = arith.constant 3 : index
      %c0_26 = arith.constant 0 : index
      %c0_27 = arith.constant 0 : index
      %49 = vector.load %arg3[%c3, %c0_26, %c0_27] : memref<5x256x256xbf16, #tpu.memory_space<vmem>>, vector<1x256x256xbf16>
      %50 = vector.shape_cast %49 : vector<1x256x256xbf16> to vector<256x256xbf16>
      %51 = arith.truncf %48 : vector<16x256xf32> to vector<16x256xbf16>
      %cst_28 = arith.constant dense<0.000000e+00> : vector<16x256xf32>
      %52 = tpu.matmul %51, %50, %cst_28 {dimension_numbers = #tpu.dot_dimension_numbers<[1], [0], [0], [1], [0, 0, 1, 1], [], []>} : vector<16x256xbf16>, vector<256x256xbf16>, vector<16x256xf32> -> vector<16x256xf32>
      %53 = vector.extract_strided_slice %12 {offsets = [4, 0], sizes = [1, 256], strides = [1, 1]} : vector<7x256xf32> to vector<1x256xf32>
      %54 = vector.broadcast %53 : vector<1x256xf32> to vector<16x256xf32>
      %55 = arith.addf %52, %54 : vector<16x256xf32>
      %56 = arith.mulf %48, %55 : vector<16x256xf32>
      %c4 = arith.constant 4 : index
      %c0_29 = arith.constant 0 : index
      %c0_30 = arith.constant 0 : index
      %57 = vector.load %arg3[%c4, %c0_29, %c0_30] : memref<5x256x256xbf16, #tpu.memory_space<vmem>>, vector<1x256x256xbf16>
      %58 = vector.shape_cast %57 : vector<1x256x256xbf16> to vector<256x256xbf16>
      %59 = arith.truncf %56 : vector<16x256xf32> to vector<16x256xbf16>
      %cst_31 = arith.constant dense<0.000000e+00> : vector<16x256xf32>
      %60 = tpu.matmul %59, %58, %cst_31 {dimension_numbers = #tpu.dot_dimension_numbers<[1], [0], [0], [1], [0, 0, 1, 1], [], []>} : vector<16x256xbf16>, vector<256x256xbf16>, vector<16x256xf32> -> vector<16x256xf32>
      %61 = vector.extract_strided_slice %12 {offsets = [5, 0], sizes = [1, 256], strides = [1, 1]} : vector<7x256xf32> to vector<1x256xf32>
      %62 = vector.broadcast %61 : vector<1x256xf32> to vector<16x256xf32>
      %63 = arith.addf %60, %62 : vector<16x256xf32>
      %64 = arith.mulf %56, %63 : vector<16x256xf32>
      %c0_32 = arith.constant 0 : index
      %c0_33 = arith.constant 0 : index
      %65 = vector.load %arg4[%c0_32, %c0_33] : memref<256x128xbf16, #tpu.memory_space<vmem>>, vector<256x128xbf16>
      %66 = arith.truncf %64 : vector<16x256xf32> to vector<16x256xbf16>
      %cst_34 = arith.constant dense<0.000000e+00> : vector<16x128xf32>
      %67 = tpu.matmul %66, %65, %cst_34 {dimension_numbers = #tpu.dot_dimension_numbers<[1], [0], [0], [1], [0, 0, 1, 1], [], []>} : vector<16x256xbf16>, vector<256x128xbf16>, vector<16x128xf32> -> vector<16x128xf32>
      %68 = vector.extract_strided_slice %12 {offsets = [6, 0], sizes = [1, 128], strides = [1, 1]} : vector<7x256xf32> to vector<1x128xf32>
      %69 = vector.broadcast %68 : vector<1x128xf32> to vector<16x128xf32>
      %70 = arith.addf %67, %69 : vector<16x128xf32>
      %c0_35 = arith.constant 0 : index
      %c0_36 = arith.constant 0 : index
      %71 = vector.load %arg6[%c0_35, %c0_36] : memref<16x128xf32, #tpu.memory_space<vmem>>, vector<16x128xf32>
      tpu.vector_store %arg6[%c0_35, %c0_36], %70 {strides = array<i32>} : memref<16x128xf32, #tpu.memory_space<vmem>>, vector<16x128xf32>,
    } else {
    }
    return
  }
  func.func @transform_0(%arg0: i32) -> (i32, i32) {
    %c0_i32 = arith.constant 0 : i32
    %c0_i32_0 = arith.constant 0 : i32
    return %c0_i32, %arg0 : i32, i32
  }
  func.func @transform_1(%arg0: i32) -> (i32, i32) {
    %c0_i32 = arith.constant 0 : i32
    %c0_i32_0 = arith.constant 0 : i32
    return %arg0, %c0_i32 : i32, i32
  }
  func.func @transform_2(%arg0: i32) -> (i32, i32, i32) {
    %c0_i32 = arith.constant 0 : i32
    %c0_i32_0 = arith.constant 0 : i32
    %c0_i32_1 = arith.constant 0 : i32
    %c0_i32_2 = arith.constant 0 : i32
    return %c0_i32, %c0_i32_0, %c0_i32_1 : i32, i32, i32
  }
  func.func @transform_3(%arg0: i32) -> (i32, i32) {
    %c0_i32 = arith.constant 0 : i32
    %c0_i32_0 = arith.constant 0 : i32
    %c0_i32_1 = arith.constant 0 : i32
    return %c0_i32, %c0_i32_0 : i32, i32
  }
  func.func @transform_4(%arg0: i32) -> (i32, i32) {
    %c0_i32 = arith.constant 0 : i32
    %c0_i32_0 = arith.constant 0 : i32
    %c0_i32_1 = arith.constant 0 : i32
    return %c0_i32, %c0_i32_0 : i32, i32
  }
  func.func @transform_5(%arg0: i32) -> (i32, i32) {
    %c0_i32 = arith.constant 0 : i32
    %c0_i32_0 = arith.constant 0 : i32
    %c0_i32_1 = arith.constant 0 : i32
    return %c0_i32, %c0_i32_0 : i32, i32
  }
}

</mosaic_0001>

<llo_original>
// kernel: tpu_custom_call.1
$region0: #{tpu_custom_call.1}
  #allocation0 [shape = 'u32[]', space=smem, size = 0x4, offset = 0x4, fixed_abs, tag = 'smem constant byte address 0x4 - core index']
  #allocation1 [shape = 'u32[144,128]{1,0:T(1,128)}', space=vmem, size = 0x12000, scoped, tag = 'internal scratch']
  #allocation2 [shape = 'f32[16,256]{1,0:T(8,128)}', space=vmem, size = 0x4000, scoped, tag = 'scratch operand']
  %s0 = inlined_call_operand.hbm [shape: bf16[16,1024], index: 0, kind: input, shape index: {}]
  %s1 = inlined_call_operand.hbm [shape: bf16[1024,256], index: 1, kind: input, shape index: {}]
  %s2 = inlined_call_operand.hbm [shape: bf16[5,256,256], index: 2, kind: input, shape index: {}]
  %s3 = inlined_call_operand.hbm [shape: bf16[256,128], index: 3, kind: input, shape index: {}]
  %s4 = inlined_call_operand.hbm [shape: f32[7,256], index: 4, kind: input, shape index: {}]
  %s5 = inlined_call_operand.hbm [shape: f32[16,128], index: 5, kind: output, shape index: {}]
  %s6 = sld [smem:[#allocation0]]
  $region81: #{tpu_custom_call.1} parent=0
    _
  %s8 = ssub.s32 1, %s6
  %s9 = scalar_select 0, %s8, %s6
  $region1: #{tpu_custom_call.1} parent=0
    #allocation3 [shape = 'u8[16384]{0}', space=vmem, size = 0x4000, scoped, tag = 'input window, operand 0']
    #allocation4 [shape = 's32[2]{0}', space=sflag, size = 0x8, scoped, tag = 'scoped memory for tpu_custom_call.1']
    #allocation5 [shape = 's32[2]{0}', space=sflag, size = 0x8, scoped, tag = 'scoped memory for tpu_custom_call.1']
    #allocation6 [shape = 'u8[262144]{0}', space=vmem, size = 0x40000, scoped, tag = 'input window, operand 1']
    #allocation7 [shape = 's32[2]{0}', space=sflag, size = 0x8, scoped, tag = 'scoped memory for tpu_custom_call.1']
    #allocation8 [shape = 'u8[655360]{0}', space=vmem, size = 0xa0000, scoped, tag = 'input window, operand 2, single buffered']
    #allocation9 [shape = 'u8[65536]{0}', space=vmem, size = 0x10000, scoped, tag = 'input window, operand 3, single buffered']
    #allocation10 [shape = 's32[1]{0}', space=sflag, size = 0x4, scoped, tag = 'scoped memory for tpu_custom_call.1']
    #allocation11 [shape = 'u8[8192]{0}', space=vmem, size = 0x2000, scoped, tag = 'input window, operand 4, single buffered']
    #allocation12 [shape = 'u8[8192]{0}', space=vmem, size = 0x2000, scoped, tag = 'output window, operand 0, single buffered']
    %10 = vsyncpa [#allocation4], 0
    %s11 = scalar_lea.sflag [#allocation4], 1
    %12 = vsyncpa %s11, 0
    %13 = vsyncpa [#allocation7], 0
    %s14 = scalar_lea.sflag [#allocation7], 1
    %15 = vsyncpa %s14, 0
    %16 = vsyncpa [#allocation10], 0
    %17 = vsyncpa [#allocation5], 0
    loop: start=0, step=1, limit=6
    $region2: #{tpu_custom_call.1} parent=1 // loop_pre_header
      _
    $region3: #{tpu_custom_call.1} parent=1 // loop_header
      %s19 = sphi 0, %s23
      %p20 = scmp.ge.s32.totalorder %s19, 6
      %s29 = sphi 0, %s31
      %s32 = sphi 0, %s29
      %s33 = sphi 0, %s32
      %s49 = sphi 0, %s33
      %s55 = sphi 0, %s57
      %s58 = sphi 0, %s55
      %s59 = sphi 0, %s58
      %s75 = sphi 0, %s59
      %s79 = sphi 0, %s79
      %s81 = sphi 0, %s79
      %s82 = sphi 0, %s81
      %s96 = sphi 0, %s82
      %s100 = sphi 0, %s100
      %s102 = sphi 0, %s100
      %s103 = sphi 0, %s102
      %s117 = sphi 0, %s103
      %s121 = sphi 0, %s121
      %s123 = sphi 0, %s121
      %s124 = sphi 0, %s123
      %s138 = sphi 0, %s124
      %s142 = sphi 0, %s142
      %s144 = sphi 0, %s142
      %s145 = sphi 0, %s144
      %s159 = sphi 0, %s145
    $region4: #{tpu_custom_call.1} parent=1 // loop_header_branch
      %22 = sbr.rel (%p20) target = $region8
    $region5: #{tpu_custom_call.1} parent=1 // loop_body
      %s24 = ssub.s32 %s19, 1
      %s25 = ssub.s32 %s19, 2
      %s26 = sadd.s32 %s19, 1
      %s27 = ssub.s32 %s19, %s26
      %p28 = scmp.eq.s32.totalorder %s27, 0
      %s30 = sadd.s32 %s29, 1
      %s31 = scalar_select %p28, %s29, %s30
      %p34 = pneg %p28
      %p35 = scmp.eq.s32.totalorder %s19, 3
      %p36 = por %p34, %p35
      %p37 = scmp.ne.s32.totalorder %s29, %s32
      %p38 = scmp.eq.s32.totalorder %s19, 0
      %p39 = por %p37, %p38
      %p40 = scmp.ne.s32.totalorder %s29, %s32
      %p41 = scmp.eq.s32.totalorder %s24, 3
      %p42 = por %p40, %p41
      %p43 = scmp.ne.s32.totalorder %s32, %s33
      %p44 = scmp.eq.s32.totalorder %s24, 0
      %p45 = por %p43, %p44
      %p46 = scmp.ne.s32.totalorder %s32, %s33
      %p47 = scmp.eq.s32.totalorder %s25, 3
      %p48 = por %p46, %p47
      %p50 = scmp.ne.s32.totalorder %s33, %s49
      %p51 = scmp.eq.s32.totalorder %s25, 0
      %p52 = por %p50, %p51
      %s53 = ssub.s32 %s19, %s26
      %p54 = scmp.eq.s32.totalorder %s53, 0
      %s56 = sadd.s32 %s55, 1
      %s57 = scalar_select %p54, %s55, %s56
      %p60 = pneg %p54
      %p61 = scmp.eq.s32.totalorder %s19, 3
      %p62 = por %p60, %p61
      %p63 = scmp.ne.s32.totalorder %s55, %s58
      %p64 = scmp.eq.s32.totalorder %s19, 0
      %p65 = por %p63, %p64
      %p66 = scmp.ne.s32.totalorder %s55, %s58
      %p67 = scmp.eq.s32.totalorder %s24, 3
      %p68 = por %p66, %p67
      %p69 = scmp.ne.s32.totalorder %s58, %s59
      %p70 = scmp.eq.s32.totalorder %s24, 0
      %p71 = por %p69, %p70
      %p72 = scmp.ne.s32.totalorder %s58, %s59
      %p73 = scmp.eq.s32.totalorder %s25, 3
      %p74 = por %p72, %p73
      %p76 = scmp.ne.s32.totalorder %s59, %s75
      %p77 = scmp.eq.s32.totalorder %s25, 0
      %p78 = por %p76, %p77
      %s80 = sadd.s32 %s79, 1
      %p83 = scmp.eq.s32.totalorder %s19, 3
      %p84 = scmp.ne.s32.totalorder %s79, %s81
      %p85 = scmp.eq.s32.totalorder %s19, 0
      %p86 = por %p84, %p85
      %p87 = scmp.ne.s32.totalorder %s79, %s81
      %p88 = scmp.eq.s32.totalorder %s24, 3
      %p89 = por %p87, %p88
      %p90 = scmp.ne.s32.totalorder %s81, %s82
      %p91 = scmp.eq.s32.totalorder %s24, 0
      %p92 = por %p90, %p91
      %p93 = scmp.ne.s32.totalorder %s81, %s82
      %p94 = scmp.eq.s32.totalorder %s25, 3
      %p95 = por %p93, %p94
      %p97 = scmp.ne.s32.totalorder %s82, %s96
      %p98 = scmp.eq.s32.totalorder %s25, 0
      %p99 = por %p97, %p98
      %s101 = sadd.s32 %s100, 1
      %p104 = scmp.eq.s32.totalorder %s19, 3
      %p105 = scmp.ne.s32.totalorder %s100, %s102
      %p106 = scmp.eq.s32.totalorder %s19, 0
      %p107 = por %p105, %p106
      %p108 = scmp.ne.s32.totalorder %s100, %s102
      %p109 = scmp.eq.s32.totalorder %s24, 3
      %p110 = por %p108, %p109
      %p111 = scmp.ne.s32.totalorder %s102, %s103
      %p112 = scmp.eq.s32.totalorder %s24, 0
      %p113 = por %p111, %p112
      %p114 = scmp.ne.s32.totalorder %s102, %s103
      %p115 = scmp.eq.s32.totalorder %s25, 3
      %p116 = por %p114, %p115
      %p118 = scmp.ne.s32.totalorder %s103, %s117
      %p119 = scmp.eq.s32.totalorder %s25, 0
      %p120 = por %p118, %p119
      %s122 = sadd.s32 %s121, 1
      %p125 = scmp.eq.s32.totalorder %s19, 3
      %p126 = scmp.ne.s32.totalorder %s121, %s123
      %p127 = scmp.eq.s32.totalorder %s19, 0
      %p128 = por %p126, %p127
      %p129 = scmp.ne.s32.totalorder %s121, %s123
      %p130 = scmp.eq.s32.totalorder %s24, 3
      %p131 = por %p129, %p130
      %p132 = scmp.ne.s32.totalorder %s123, %s124
      %p133 = scmp.eq.s32.totalorder %s24, 0
      %p134 = por %p132, %p133
      %p135 = scmp.ne.s32.totalorder %s123, %s124
      %p136 = scmp.eq.s32.totalorder %s25, 3
      %p137 = por %p135, %p136
      %p139 = scmp.ne.s32.totalorder %s124, %s138
      %p140 = scmp.eq.s32.totalorder %s25, 0
      %p141 = por %p139, %p140
      %s143 = sadd.s32 %s142, 1
      %p146 = scmp.eq.s32.totalorder %s19, 3
      %p147 = scmp.ne.s32.totalorder %s142, %s144
      %p148 = scmp.eq.s32.totalorder %s19, 0
      %p149 = por %p147, %p148
      %p150 = scmp.ne.s32.totalorder %s142, %s144
      %p151 = scmp.eq.s32.totalorder %s24, 3
      %p152 = por %p150, %p151
      %p153 = scmp.ne.s32.totalorder %s144, %s145
      %p154 = scmp.eq.s32.totalorder %s24, 0
      %p155 = por %p153, %p154
      %p156 = scmp.ne.s32.totalorder %s144, %s145
      %p157 = scmp.eq.s32.totalorder %s25, 3
      %p158 = por %p156, %p157
      %p160 = scmp.ne.s32.totalorder %s145, %s159
      %p161 = scmp.eq.s32.totalorder %s25, 0
      %p162 = por %p160, %p161
      %p163 = scmp.le.s32.totalorder 1, %s19
      %p164 = scmp.lt.s32.totalorder %s19, 5
      %p165 = pnand %p163, %p164
      %p166 = pneg %p165
      // Predicated region
      $region9: #{tpu_custom_call.1} parent=5 // pred_check
        _
      $region10: #{tpu_custom_call.1} parent=5 // pred_check_branch
        %168 = sbr.rel (%p165) target = $region12
      $region11: #{tpu_custom_call.1} parent=5 // pred_region
        %s169 = ssub.s32 %s19, 1
        // Predicated region
        $region13: #{tpu_custom_call.1} parent=11 // pred_check
          %p170 = pneg %p92
        $region14: #{tpu_custom_call.1} parent=11 // pred_check_branch
          %172 = sbr.rel (%p170) target = $region16
        $region15: #{tpu_custom_call.1} parent=11 // pred_region
          %s174 = ssub.s32 20480, 20480
          %175 = vsyncadd [#allocation7], %s174
          %s176 = sshll.u32 [#allocation8], 4
          %s177 = int_to_ptr.vmem [resolvable:$true] %s176
          %182 = dma.hbm_to_vmem [thread:$0]  %s2, 20480, %s177, [#allocation7], 128, 128, 8
        $region16: #{tpu_custom_call.1} parent=11 // pred_fallthru
          _
        // Predicated region
        $region17: #{tpu_custom_call.1} parent=11 // pred_check
          %p183 = pneg %p113
        $region18: #{tpu_custom_call.1} parent=11 // pred_check_branch
          %185 = sbr.rel (%p183) target = $region20
        $region19: #{tpu_custom_call.1} parent=11 // pred_region
          %s187 = ssub.s32 2048, 2048
          %188 = vsyncadd [#allocation10], %s187
          %s189 = sshll.u32 [#allocation9], 4
          %s190 = int_to_ptr.vmem [resolvable:$true] %s189
          %195 = dma.hbm_to_vmem [thread:$0]  %s3, 2048, %s190, [#allocation10], 64, 64, 4
        $region20: #{tpu_custom_call.1} parent=11 // pred_fallthru
          _
        // Predicated region
        $region21: #{tpu_custom_call.1} parent=11 // pred_check
          %p196 = pneg %p134
        $region22: #{tpu_custom_call.1} parent=11 // pred_check_branch
          %198 = sbr.rel (%p196) target = $region24
        $region23: #{tpu_custom_call.1} parent=11 // pred_region
          %s200 = ssub.s32 256, 256
          %201 = vsyncadd [#allocation10], %s200
          %s203 = sshll.u32 [#allocation11], 4
          %s204 = int_to_ptr.vmem [resolvable:$true] %s203
          %206 = dma.hbm_to_vmem [thread:$0]  %s4, 256, %s204, [#allocation10]
        $region24: #{tpu_custom_call.1} parent=11 // pred_fallthru
          _
      $region12: #{tpu_custom_call.1} parent=5 // pred_fallthru
        _
      %p207 = scmp.lt.s32.totalorder %s19, 4
      // Predicated region
      $region25: #{tpu_custom_call.1} parent=5 // pred_check
        %p208 = pneg %p207
      $region26: #{tpu_custom_call.1} parent=5 // pred_check_branch
        %210 = sbr.rel (%p208) target = $region28
      $region27: #{tpu_custom_call.1} parent=5 // pred_region
        // Predicated region
        $region29: #{tpu_custom_call.1} parent=27 // pred_check
          %p211 = pneg %p39
        $region30: #{tpu_custom_call.1} parent=27 // pred_check_branch
          %213 = sbr.rel (%p211) target = $region32
        $region31: #{tpu_custom_call.1} parent=27 // pred_region
          %s214 = sand.u32 %s29, 1
          %s215 = scalar_lea.sflag [#allocation4], %s214
          %s216 = sand.u32 %s29, 1
          %s217 = smul.addr %s216, 16
          %s218 = scalar_lea.vmem [#allocation3], %s217
          %s219 = smul.u32 2, %s19
          %s221 = ssub.s32 256, 256
          %222 = vsyncadd %s215, %s221
          %s223 = smul.addr %s219, 64
          %s224 = scalar_lea.hbm %s0, %s223
          %s225 = sshll.u32 %s218, 4
          %s226 = int_to_ptr.vmem [resolvable:$true] %s225
          %231 = dma.hbm_to_vmem [thread:$0]  %s224, 256, %s226, %s215, 512, 128, 8
        $region32: #{tpu_custom_call.1} parent=27 // pred_fallthru
          _
        // Predicated region
        $region33: #{tpu_custom_call.1} parent=27 // pred_check
          %p232 = pneg %p65
        $region34: #{tpu_custom_call.1} parent=27 // pred_check_branch
          %234 = sbr.rel (%p232) target = $region36
        $region35: #{tpu_custom_call.1} parent=27 // pred_region
          %s235 = sand.u32 %s19, 1
          %s236 = scalar_lea.sflag [#allocation7], %s235
          %s237 = sand.u32 %s55, 1
          %s238 = smul.addr %s237, 256
          %s239 = scalar_lea.vmem [#allocation6], %s238
          %s240 = smul.u32 32, %s19
          %s242 = ssub.s32 4096, 4096
          %243 = vsyncadd %s236, %s242
          %s244 = smul.addr %s240, 2
          %s245 = smul.addr %s244, 64
          %s246 = scalar_lea.hbm %s1, %s245
          %s247 = sshll.u32 %s239, 4
          %s248 = int_to_ptr.vmem [resolvable:$true] %s247
          %253 = dma.hbm_to_vmem [thread:$0]  %s246, 4096, %s248, %s236, 128, 128, 8
        $region36: #{tpu_custom_call.1} parent=27 // pred_fallthru
          _
      $region28: #{tpu_custom_call.1} parent=5 // pred_fallthru
        _
      %p254 = scmp.le.s32.totalorder 1, %s19
      %p255 = scmp.lt.s32.totalorder %s19, 5
      %p256 = pnand %p254, %p255
      %p257 = pneg %p256
      // Predicated region
      $region37: #{tpu_custom_call.1} parent=5 // pred_check
        _
      $region38: #{tpu_custom_call.1} parent=5 // pred_check_branch
        %259 = sbr.rel (%p256) target = $region40
      $region39: #{tpu_custom_call.1} parent=5 // pred_region
        %s260 = ssub.s32 %s19, 1
        %s261 = sand.u32 %s32, 1
        %s262 = scalar_lea.sflag [#allocation4], %s261
        %s263 = sand.u32 %s32, 1
        %s264 = smul.addr %s263, 16
        %s265 = scalar_lea.vmem [#allocation3], %s264
        // Predicated region
        $region41: #{tpu_custom_call.1} parent=39 // pred_check
          %p266 = pneg %p45
        $region42: #{tpu_custom_call.1} parent=39 // pred_check_branch
          %268 = sbr.rel (%p266) target = $region44
        $region43: #{tpu_custom_call.1} parent=39 // pred_region
          %269 = dma.done %s262, 256
        $region44: #{tpu_custom_call.1} parent=39 // pred_fallthru
          _
        %s270 = sand.u32 %s24, 1
        %s271 = scalar_lea.sflag [#allocation7], %s270
        %s272 = sand.u32 %s58, 1
        %s273 = smul.addr %s272, 256
        %s274 = scalar_lea.vmem [#allocation6], %s273
        // Predicated region
        $region45: #{tpu_custom_call.1} parent=39 // pred_check
          %p275 = pneg %p71
        $region46: #{tpu_custom_call.1} parent=39 // pred_check_branch
          %277 = sbr.rel (%p275) target = $region48
        $region47: #{tpu_custom_call.1} parent=39 // pred_region
          %278 = dma.done %s271, 4096
        $region48: #{tpu_custom_call.1} parent=39 // pred_fallthru
          _
        // Predicated region
        $region49: #{tpu_custom_call.1} parent=39 // pred_check
          %p279 = pneg %p92
        $region50: #{tpu_custom_call.1} parent=39 // pred_check_branch
          %281 = sbr.rel (%p279) target = $region52
        $region51: #{tpu_custom_call.1} parent=39 // pred_region
          %282 = dma.done [#allocation7], 20480
        $region52: #{tpu_custom_call.1} parent=39 // pred_fallthru
          _
        // Predicated region
        $region53: #{tpu_custom_call.1} parent=39 // pred_check
          %p283 = pneg %p113
        $region54: #{tpu_custom_call.1} parent=39 // pred_check_branch
          %285 = sbr.rel (%p283) target = $region56
        $region55: #{tpu_custom_call.1} parent=39 // pred_region
          %286 = dma.done [#allocation10], 2048
        $region56: #{tpu_custom_call.1} parent=39 // pred_fallthru
          _
        // Predicated region
        $region57: #{tpu_custom_call.1} parent=39 // pred_check
          %p287 = pneg %p134
        $region58: #{tpu_custom_call.1} parent=39 // pred_check_branch
          %289 = sbr.rel (%p287) target = $region60
        $region59: #{tpu_custom_call.1} parent=39 // pred_region
          %290 = dma.done [#allocation10], 256
        $region60: #{tpu_custom_call.1} parent=39 // pred_fallthru
          _
        %s291 = sand.u32 %s32, 1
        %s292 = scalar_lea.sflag [#allocation4], %s291
        %s293 = sand.u32 %s32, 1
        %s294 = smul.addr %s293, 16
        %s295 = scalar_lea.vmem [#allocation3], %s294
        %p296 = pneg %p45
        %p297 = pneg %p42
        %s298 = sand.u32 %s24, 1
        %s299 = scalar_lea.sflag [#allocation7], %s298
        %s300 = sand.u32 %s58, 1
        %s301 = smul.addr %s300, 256
        %s302 = scalar_lea.vmem [#allocation6], %s301
        %p303 = pneg %p71
        %p304 = pneg %p68
        %p305 = pneg %p92
        %p306 = pneg %p89
        %p307 = pneg %p113
        %p308 = pneg %p110
        %p309 = pneg %p134
        %p310 = pneg %p131
        %p311 = pneg %p155
        %p312 = pneg %p152
        %s313 = smul.u32 2, %s24
        %s314 = smul.u32 32, %s24
        %p316 = scmp.eq.s32.totalorder %s24, 0
        // Predicated region
        $region61: #{tpu_custom_call.1} parent=39 // pred_check
          %p317 = pneg %p316
        $region62: #{tpu_custom_call.1} parent=39 // pred_check_branch
          %319 = sbr.rel (%p317) target = $region64
        $region63: #{tpu_custom_call.1} parent=39 // pred_region
          %320 = vst [vmem:[#allocation2] sm:$0xff] 0.0
          %321 = vst [vmem:[#allocation2 + $0x8] sm:$0xff] 0.0
          %322 = vst [vmem:[#allocation2 + $0x10] sm:$0xff] 0.0
          %323 = vst [vmem:[#allocation2 + $0x18] sm:$0xff] 0.0
        $region64: #{tpu_custom_call.1} parent=39 // pred_fallthru
          _
        %v324 = vld [vmem:[#allocation2] sm:$0xff]
        %v325 = vld [vmem:[#allocation2 + $0x8] sm:$0xff]
        %v326 = vld [vmem:[#allocation2 + $0x10] sm:$0xff]
        %v327 = vld [vmem:[#allocation2 + $0x18] sm:$0xff]
        %v328 = vld [vmem:[%s265] sm:$0xff]
        %v329 = vld [vmem:[%s265 + $0x8] sm:$0xff]
        %v330 = vld [vmem:[%s274] sm:$0xff]
        %v331 = vld [vmem:[%s274 + $0x8] sm:$0xff]
        %v332 = vld [vmem:[%s274 + $0x10] sm:$0xff]
        %v333 = vld [vmem:[%s274 + $0x18] sm:$0xff]
        %v334 = vld [vmem:[%s274 + $0x20] sm:$0xff]
        %v335 = vld [vmem:[%s274 + $0x28] sm:$0xff]
        %v336 = vld [vmem:[%s274 + $0x30] sm:$0xff]
        %v337 = vld [vmem:[%s274 + $0x38] sm:$0xff]
        %v338 = vld [vmem:[%s274 + $0x40] sm:$0xff]
        %v339 = vld [vmem:[%s274 + $0x48] sm:$0xff]
        %v340 = vld [vmem:[%s274 + $0x50] sm:$0xff]
        %v341 = vld [vmem:[%s274 + $0x58] sm:$0xff]
        %v342 = vld [vmem:[%s274 + $0x60] sm:$0xff]
        %v343 = vld [vmem:[%s274 + $0x68] sm:$0xff]
        %v344 = vld [vmem:[%s274 + $0x70] sm:$0xff]
        %v345 = vld [vmem:[%s274 + $0x78] sm:$0xff]
        %v346 = vld [vmem:[%s274 + $0x80] sm:$0xff]
        %v347 = vld [vmem:[%s274 + $0x88] sm:$0xff]
        %v348 = vld [vmem:[%s274 + $0x90] sm:$0xff]
        %v349 = vld [vmem:[%s274 + $0x98] sm:$0xff]
        %v350 = vld [vmem:[%s274 + $0xa0] sm:$0xff]
        %v351 = vld [vmem:[%s274 + $0xa8] sm:$0xff]
        %v352 = vld [vmem:[%s274 + $0xb0] sm:$0xff]
        %v353 = vld [vmem:[%s274 + $0xb8] sm:$0xff]
        %v354 = vld [vmem:[%s274 + $0xc0] sm:$0xff]
        %v355 = vld [vmem:[%s274 + $0xc8] sm:$0xff]
        %v356 = vld [vmem:[%s274 + $0xd0] sm:$0xff]
        %v357 = vld [vmem:[%s274 + $0xd8] sm:$0xff]
        %v358 = vld [vmem:[%s274 + $0xe0] sm:$0xff]
        %v359 = vld [vmem:[%s274 + $0xe8] sm:$0xff]
        %v360 = vld [vmem:[%s274 + $0xf0] sm:$0xff]
        %v361 = vld [vmem:[%s274 + $0xf8] sm:$0xff]
        %v364 = vunpack.c.l.b16 %v328
        %v365 = vunpack.c.h.b16 %v328
        %v366 = vunpack.c.l.b16 %v329
        %v367 = vunpack.c.h.b16 %v329
        %v368 = vpack.c.b16 %v366, %v364
        %v369 = vpack.c.b16 %v367, %v365
        %v404 = vunpack.c.l.b16 %v330
        %v405 = vunpack.c.h.b16 %v330
        %v406 = vunpack.c.l.b16 %v331
        %v407 = vunpack.c.h.b16 %v331
        %v408 = vunpack.c.l.b16 %v332
        %v409 = vunpack.c.h.b16 %v332
        %v410 = vunpack.c.l.b16 %v333
        %v411 = vunpack.c.h.b16 %v333
        %v412 = vunpack.c.l.b16 %v334
        %v413 = vunpack.c.h.b16 %v334
        %v414 = vunpack.c.l.b16 %v335
        %v415 = vunpack.c.h.b16 %v335
        %v416 = vunpack.c.l.b16 %v336
        %v417 = vunpack.c.h.b16 %v336
        %v418 = vunpack.c.l.b16 %v337
        %v419 = vunpack.c.h.b16 %v337
        %v420 = vunpack.c.l.b16 %v338
        %v421 = vunpack.c.h.b16 %v338
        %v422 = vunpack.c.l.b16 %v339
        %v423 = vunpack.c.h.b16 %v339
        %v424 = vunpack.c.l.b16 %v340
        %v425 = vunpack.c.h.b16 %v340
        %v426 = vunpack.c.l.b16 %v341
        %v427 = vunpack.c.h.b16 %v341
        %v428 = vunpack.c.l.b16 %v342
        %v429 = vunpack.c.h.b16 %v342
        %v430 = vunpack.c.l.b16 %v343
        %v431 = vunpack.c.h.b16 %v343
        %v432 = vunpack.c.l.b16 %v344
        %v433 = vunpack.c.h.b16 %v344
        %v434 = vunpack.c.l.b16 %v345
        %v435 = vunpack.c.h.b16 %v345
        %v436 = vunpack.c.l.b16 %v346
        %v437 = vunpack.c.h.b16 %v346
        %v438 = vunpack.c.l.b16 %v347
        %v439 = vunpack.c.h.b16 %v347
        %v440 = vunpack.c.l.b16 %v348
        %v441 = vunpack.c.h.b16 %v348
        %v442 = vunpack.c.l.b16 %v349
        %v443 = vunpack.c.h.b16 %v349
        %v444 = vunpack.c.l.b16 %v350
        %v445 = vunpack.c.h.b16 %v350
        %v446 = vunpack.c.l.b16 %v351
        %v447 = vunpack.c.h.b16 %v351
        %v448 = vunpack.c.l.b16 %v352
        %v449 = vunpack.c.h.b16 %v352
        %v450 = vunpack.c.l.b16 %v353
        %v451 = vunpack.c.h.b16 %v353
        %v452 = vunpack.c.l.b16 %v354
        %v453 = vunpack.c.h.b16 %v354
        %v454 = vunpack.c.l.b16 %v355
        %v455 = vunpack.c.h.b16 %v355
        %v456 = vunpack.c.l.b16 %v356
        %v457 = vunpack.c.h.b16 %v356
        %v458 = vunpack.c.l.b16 %v357
        %v459 = vunpack.c.h.b16 %v357
        %v460 = vunpack.c.l.b16 %v358
        %v461 = vunpack.c.h.b16 %v358
        %v462 = vunpack.c.l.b16 %v359
        %v463 = vunpack.c.h.b16 %v359
        %v464 = vunpack.c.l.b16 %v360
        %v465 = vunpack.c.h.b16 %v360
        %v466 = vunpack.c.l.b16 %v361
        %v467 = vunpack.c.h.b16 %v361
        %v468 = vpack.c.b16 %v406, %v404
        %v469 = vpack.c.b16 %v407, %v405
        %v470 = vpack.c.b16 %v410, %v408
        %v471 = vpack.c.b16 %v411, %v409
        %v472 = vpack.c.b16 %v414, %v412
        %v473 = vpack.c.b16 %v415, %v413
        %v474 = vpack.c.b16 %v418, %v416
        %v475 = vpack.c.b16 %v419, %v417
        %v476 = vpack.c.b16 %v422, %v420
        %v477 = vpack.c.b16 %v423, %v421
        %v478 = vpack.c.b16 %v426, %v424
        %v479 = vpack.c.b16 %v427, %v425
        %v480 = vpack.c.b16 %v430, %v428
        %v481 = vpack.c.b16 %v431, %v429
        %v482 = vpack.c.b16 %v434, %v432
        %v483 = vpack.c.b16 %v435, %v433
        %v484 = vpack.c.b16 %v438, %v436
        %v485 = vpack.c.b16 %v439, %v437
        %v486 = vpack.c.b16 %v442, %v440
        %v487 = vpack.c.b16 %v443, %v441
        %v488 = vpack.c.b16 %v446, %v444
        %v489 = vpack.c.b16 %v447, %v445
        %v490 = vpack.c.b16 %v450, %v448
        %v491 = vpack.c.b16 %v451, %v449
        %v492 = vpack.c.b16 %v454, %v452
        %v493 = vpack.c.b16 %v455, %v453
        %v494 = vpack.c.b16 %v458, %v456
        %v495 = vpack.c.b16 %v459, %v457
        %v496 = vpack.c.b16 %v462, %v460
        %v497 = vpack.c.b16 %v463, %v461
        %v498 = vpack.c.b16 %v466, %v464
        %v499 = vpack.c.b16 %v467, %v465
        %532 = vmatprep.subr.bf16.mxu0 %v483
        %533 = vmatpush1.bf16.msra.mxu0 %v482
        %534 = vmatprep.subr.bf16.mxu0 %v481
        %535 = vmatpush1.bf16.msra.mxu0 %v480
        %536 = vmatprep.subr.bf16.mxu0 %v479
        %537 = vmatpush1.bf16.msra.mxu0 %v478
        %538 = vmatprep.subr.bf16.mxu0 %v477
        %539 = vmatpush1.bf16.msra.mxu0 %v476
        %540 = vmatprep.subr.bf16.mxu0 %v475
        %541 = vmatpush1.bf16.msra.mxu0 %v474
        %542 = vmatprep.subr.bf16.mxu0 %v473
        %543 = vmatpush1.bf16.msra.mxu0 %v472
        %544 = vmatprep.subr.bf16.mxu0 %v471
        %545 = vmatpush1.bf16.msra.mxu0 %v470
        %546 = vmatprep.subr.bf16.mxu0 %v469
        %547 = vmatpush1.bf16.msra.mxu0 %v468
        %548 = vmatprep.subr.bf16.mxu0 %v499
        %549 = vmatpush2.bf16.msra.mxu0 %v498
        %550 = vmatprep.subr.bf16.mxu0 %v497
        %551 = vmatpush2.bf16.msra.mxu0 %v496
        %552 = vmatprep.subr.bf16.mxu0 %v495
        %553 = vmatpush2.bf16.msra.mxu0 %v494
        %554 = vmatprep.subr.bf16.mxu0 %v493
        %555 = vmatpush2.bf16.msra.mxu0 %v492
        %556 = vmatprep.subr.bf16.mxu0 %v491
        %557 = vmatpush2.bf16.msra.mxu0 %v490
        %558 = vmatprep.subr.bf16.mxu0 %v489
        %559 = vmatpush2.bf16.msra.mxu0 %v488
        %560 = vmatprep.subr.bf16.mxu0 %v487
        %561 = vmatpush2.bf16.msra.mxu0 %v486
        %562 = vmatprep.subr.bf16.mxu0 %v485
        %563 = vmatpush2.bf16.msra.mxu0 %v484
        %564 = vmatprep.mubr.bf16.mxu0 %v369
        %565 = vmatmul.mubr.bf16.gmra.mxu0 %v368
        %v566 = vpop.f32.mrf.mxu0
        %v567 = vadd.f32 0.0, %v566
        %v568 = vpop.f32.mrf.mxu0
        %v569 = vadd.f32 0.0, %v568
        %v570 = vpop.f32.mrf.mxu0
        %v571 = vadd.f32 0.0, %v570
        %v572 = vpop.f32.mrf.mxu0
        %v573 = vadd.f32 0.0, %v572
        %574 = vdwg.mxu0
        %v575 = vadd.f32 %v324, %v567
        %v576 = vadd.f32 %v325, %v569
        %v577 = vadd.f32 %v326, %v571
        %v578 = vadd.f32 %v327, %v573
        %579 = vst [vmem:[#allocation2] sm:$0xff] %v575
        %580 = vst [vmem:[#allocation2 + $0x8] sm:$0xff] %v576
        %581 = vst [vmem:[#allocation2 + $0x10] sm:$0xff] %v577
        %582 = vst [vmem:[#allocation2 + $0x18] sm:$0xff] %v578
        %p583 = scmp.eq.s32.totalorder %s24, 3
        // Predicated region
        $region65: #{tpu_custom_call.1} parent=39 // pred_check
          %p584 = pneg %p583
        $region66: #{tpu_custom_call.1} parent=39 // pred_check_branch
          %586 = sbr.rel (%p584) target = $region68
        $region67: #{tpu_custom_call.1} parent=39 // pred_region
          %v587 = vld [vmem:[#allocation11] sm:$0x7f]
          %v588 = vld [vmem:[#allocation11 + $0x8] sm:$0x7f]
          %v589 = vld [vmem:[#allocation2] sm:$0xff]
          %v590 = vld [vmem:[#allocation2 + $0x8] sm:$0xff]
          %v591 = vld [vmem:[#allocation2 + $0x10] sm:$0xff]
          %v592 = vld [vmem:[#allocation2 + $0x18] sm:$0xff]
          %v593 = vlaneseq
          %v594 = vshrl.u32 %v593, 7
          %v595 = vsub.s32 0, %v594
          %v596 = vrot.slane %v587, %v595
          %v597 = vlaneseq
          %v598 = vshrl.u32 %v597, 7
          %v599 = vsub.s32 0, %v598
          %v600 = vrot.slane %v588, %v599
          %v601 = vadd.f32 %v589, %v596
          %v602 = vadd.f32 %v590, %v600
          %v603 = vadd.f32 %v591, %v596
          %v604 = vadd.f32 %v592, %v600
          %v605 = vld [vmem:[#allocation8] sm:$0xff]
          %v606 = vld [vmem:[#allocation8 + $0x8] sm:$0xff]
          %v607 = vld [vmem:[#allocation8 + $0x10] sm:$0xff]
          %v608 = vld [vmem:[#allocation8 + $0x18] sm:$0xff]
          %v609 = vld [vmem:[#allocation8 + $0x20] sm:$0xff]
          %v610 = vld [vmem:[#allocation8 + $0x28] sm:$0xff]
          %v611 = vld [vmem:[#allocation8 + $0x30] sm:$0xff]
          %v612 = vld [vmem:[#allocation8 + $0x38] sm:$0xff]
          %v613 = vld [vmem:[#allocation8 + $0x40] sm:$0xff]
          %v614 = vld [vmem:[#allocation8 + $0x48] sm:$0xff]
          %v615 = vld [vmem:[#allocation8 + $0x50] sm:$0xff]
          %v616 = vld [vmem:[#allocation8 + $0x58] sm:$0xff]
          %v617 = vld [vmem:[#allocation8 + $0x60] sm:$0xff]
          %v618 = vld [vmem:[#allocation8 + $0x68] sm:$0xff]
          %v619 = vld [vmem:[#allocation8 + $0x70] sm:$0xff]
          %v620 = vld [vmem:[#allocation8 + $0x78] sm:$0xff]
          %v621 = vld [vmem:[#allocation8 + $0x80] sm:$0xff]
          %v622 = vld [vmem:[#allocation8 + $0x88] sm:$0xff]
          %v623 = vld [vmem:[#allocation8 + $0x90] sm:$0xff]
          %v624 = vld [vmem:[#allocation8 + $0x98] sm:$0xff]
          %v625 = vld [vmem:[#allocation8 + $0xa0] sm:$0xff]
          %v626 = vld [vmem:[#allocation8 + $0xa8] sm:$0xff]
          %v627 = vld [vmem:[#allocation8 + $0xb0] sm:$0xff]
          %v628 = vld [vmem:[#allocation8 + $0xb8] sm:$0xff]
          %v629 = vld [vmem:[#allocation8 + $0xc0] sm:$0xff]
          %v630 = vld [vmem:[#allocation8 + $0xc8] sm:$0xff]
          %v631 = vld [vmem:[#allocation8 + $0xd0] sm:$0xff]
          %v632 = vld [vmem:[#allocation8 + $0xd8] sm:$0xff]
          %v633 = vld [vmem:[#allocation8 + $0xe0] sm:$0xff]
          %v634 = vld [vmem:[#allocation8 + $0xe8] sm:$0xff]
          %v635 = vld [vmem:[#allocation8 + $0xf0] sm:$0xff]
          %v636 = vld [vmem:[#allocation8 + $0xf8] sm:$0xff]
          %v637 = vpack.c.bf16 %v603, %v601
          %v638 = vpack.c.bf16 %v604, %v602
          %v639 = vlaneseq
          %v640 = vshrl.u32 %v639, 7
          %v641 = vsub.s32 1, %v640
          %v642 = vrot.slane %v587, %v641
          %v643 = vlaneseq
          %v644 = vshrl.u32 %v643, 7
          %v645 = vsub.s32 1, %v644
          %v646 = vrot.slane %v588, %v645
          %v679 = vunpack.c.l.b16 %v605
          %v680 = vunpack.c.h.b16 %v605
          %v681 = vunpack.c.l.b16 %v606
          %v682 = vunpack.c.h.b16 %v606
          %v683 = vunpack.c.l.b16 %v607
          %v684 = vunpack.c.h.b16 %v607
          %v685 = vunpack.c.l.b16 %v608
          %v686 = vunpack.c.h.b16 %v608
          %v687 = vunpack.c.l.b16 %v609
          %v688 = vunpack.c.h.b16 %v609
          %v689 = vunpack.c.l.b16 %v610
          %v690 = vunpack.c.h.b16 %v610
          %v691 = vunpack.c.l.b16 %v611
          %v692 = vunpack.c.h.b16 %v611
          %v693 = vunpack.c.l.b16 %v612
          %v694 = vunpack.c.h.b16 %v612
          %v695 = vunpack.c.l.b16 %v613
          %v696 = vunpack.c.h.b16 %v613
          %v697 = vunpack.c.l.b16 %v614
          %v698 = vunpack.c.h.b16 %v614
          %v699 = vunpack.c.l.b16 %v615
          %v700 = vunpack.c.h.b16 %v615
          %v701 = vunpack.c.l.b16 %v616
          %v702 = vunpack.c.h.b16 %v616
          %v703 = vunpack.c.l.b16 %v617
          %v704 = vunpack.c.h.b16 %v617
          %v705 = vunpack.c.l.b16 %v618
          %v706 = vunpack.c.h.b16 %v618
          %v707 = vunpack.c.l.b16 %v619
          %v708 = vunpack.c.h.b16 %v619
          %v709 = vunpack.c.l.b16 %v620
          %v710 = vunpack.c.h.b16 %v620
          %v711 = vunpack.c.l.b16 %v621
          %v712 = vunpack.c.h.b16 %v621
          %v713 = vunpack.c.l.b16 %v622
          %v714 = vunpack.c.h.b16 %v622
          %v715 = vunpack.c.l.b16 %v623
          %v716 = vunpack.c.h.b16 %v623
          %v717 = vunpack.c.l.b16 %v624
          %v718 = vunpack.c.h.b16 %v624
          %v719 = vunpack.c.l.b16 %v625
          %v720 = vunpack.c.h.b16 %v625
          %v721 = vunpack.c.l.b16 %v626
          %v722 = vunpack.c.h.b16 %v626
          %v723 = vunpack.c.l.b16 %v627
          %v724 = vunpack.c.h.b16 %v627
          %v725 = vunpack.c.l.b16 %v628
          %v726 = vunpack.c.h.b16 %v628
          %v727 = vunpack.c.l.b16 %v629
          %v728 = vunpack.c.h.b16 %v629
          %v729 = vunpack.c.l.b16 %v630
          %v730 = vunpack.c.h.b16 %v630
          %v731 = vunpack.c.l.b16 %v631
          %v732 = vunpack.c.h.b16 %v631
          %v733 = vunpack.c.l.b16 %v632
          %v734 = vunpack.c.h.b16 %v632
          %v735 = vunpack.c.l.b16 %v633
          %v736 = vunpack.c.h.b16 %v633
          %v737 = vunpack.c.l.b16 %v634
          %v738 = vunpack.c.h.b16 %v634
          %v739 = vunpack.c.l.b16 %v635
          %v740 = vunpack.c.h.b16 %v635
          %v741 = vunpack.c.l.b16 %v636
          %v742 = vunpack.c.h.b16 %v636
          %v743 = vpack.c.b16 %v681, %v679
          %v744 = vpack.c.b16 %v682, %v680
          %v745 = vpack.c.b16 %v685, %v683
          %v746 = vpack.c.b16 %v686, %v684
          %v747 = vpack.c.b16 %v689, %v687
          %v748 = vpack.c.b16 %v690, %v688
          %v749 = vpack.c.b16 %v693, %v691
          %v750 = vpack.c.b16 %v694, %v692
          %v751 = vpack.c.b16 %v697, %v695
          %v752 = vpack.c.b16 %v698, %v696
          %v753 = vpack.c.b16 %v701, %v699
          %v754 = vpack.c.b16 %v702, %v700
          %v755 = vpack.c.b16 %v705, %v703
          %v756 = vpack.c.b16 %v706, %v704
          %v757 = vpack.c.b16 %v709, %v707
          %v758 = vpack.c.b16 %v710, %v708
          %v759 = vpack.c.b16 %v713, %v711
          %v760 = vpack.c.b16 %v714, %v712
          %v761 = vpack.c.b16 %v717, %v715
          %v762 = vpack.c.b16 %v718, %v716
          %v763 = vpack.c.b16 %v721, %v719
          %v764 = vpack.c.b16 %v722, %v720
          %v765 = vpack.c.b16 %v725, %v723
          %v766 = vpack.c.b16 %v726, %v724
          %v767 = vpack.c.b16 %v729, %v727
          %v768 = vpack.c.b16 %v730, %v728
          %v769 = vpack.c.b16 %v733, %v731
          %v770 = vpack.c.b16 %v734, %v732
          %v771 = vpack.c.b16 %v737, %v735
          %v772 = vpack.c.b16 %v738, %v736
          %v773 = vpack.c.b16 %v741, %v739
          %v774 = vpack.c.b16 %v742, %v740
          %807 = vmatprep.subr.bf16.mxu0 %v758
          %808 = vmatpush1.bf16.msra.mxu0 %v757
          %809 = vmatprep.subr.bf16.mxu0 %v756
          %810 = vmatpush1.bf16.msra.mxu0 %v755
          %811 = vmatprep.subr.bf16.mxu0 %v754
          %812 = vmatpush1.bf16.msra.mxu0 %v753
          %813 = vmatprep.subr.bf16.mxu0 %v752
          %814 = vmatpush1.bf16.msra.mxu0 %v751
          %815 = vmatprep.subr.bf16.mxu0 %v750
          %816 = vmatpush1.bf16.msra.mxu0 %v749
          %817 = vmatprep.subr.bf16.mxu0 %v748
          %818 = vmatpush1.bf16.msra.mxu0 %v747
          %819 = vmatprep.subr.bf16.mxu0 %v746
          %820 = vmatpush1.bf16.msra.mxu0 %v745
          %821 = vmatprep.subr.bf16.mxu0 %v744
          %822 = vmatpush1.bf16.msra.mxu0 %v743
          %823 = vmatprep.subr.bf16.mxu0 %v774
          %824 = vmatpush2.bf16.msra.mxu0 %v773
          %825 = vmatprep.subr.bf16.mxu0 %v772
          %826 = vmatpush2.bf16.msra.mxu0 %v771
          %827 = vmatprep.subr.bf16.mxu0 %v770
          %828 = vmatpush2.bf16.msra.mxu0 %v769
          %829 = vmatprep.subr.bf16.mxu0 %v768
          %830 = vmatpush2.bf16.msra.mxu0 %v767
          %831 = vmatprep.subr.bf16.mxu0 %v766
          %832 = vmatpush2.bf16.msra.mxu0 %v765
          %833 = vmatprep.subr.bf16.mxu0 %v764
          %834 = vmatpush2.bf16.msra.mxu0 %v763
          %835 = vmatprep.subr.bf16.mxu0 %v762
          %836 = vmatpush2.bf16.msra.mxu0 %v761
          %837 = vmatprep.subr.bf16.mxu0 %v760
          %838 = vmatpush2.bf16.msra.mxu0 %v759
          %839 = vmatprep.mubr.bf16.mxu0 %v638
          %840 = vmatmul.mubr.bf16.gmra.mxu0 %v637
          %v841 = vpop.f32.mrf.mxu0
          %v842 = vadd.f32 %v642, %v841
          %v843 = vpop.f32.mrf.mxu0
          %v844 = vadd.f32 %v646, %v843
          %v845 = vpop.f32.mrf.mxu0
          %v846 = vadd.f32 %v642, %v845
          %v847 = vpop.f32.mrf.mxu0
          %v848 = vadd.f32 %v646, %v847
          %849 = vdwg.mxu0
          %v850 = vmul.f32 %v601, 0.7978846
          %v851 = vmul.f32 %v602, 0.7978846
          %v852 = vmul.f32 %v603, 0.7978846
          %v853 = vmul.f32 %v604, 0.7978846
          %v854 = vadd.f32 %v850, 1.0
          %v855 = vadd.f32 %v851, 1.0
          %v856 = vadd.f32 %v852, 1.0
          %v857 = vadd.f32 %v853, 1.0
          %v858 = vtanh.pop %v854
          %v859 = vtanh.pop %v855
          %v860 = vtanh.pop %v856
          %v861 = vtanh.pop %v857
          %v862 = vmul.f32 %v842, %v858
          %v863 = vmul.f32 %v844, %v859
          %v864 = vmul.f32 %v846, %v860
          %v865 = vmul.f32 %v848, %v861
          %v866 = vmul.f32 %v862, 0.044715
          %v867 = vmul.f32 %v863, 0.044715
          %v868 = vmul.f32 %v864, 0.044715
          %v869 = vmul.f32 %v865, 0.044715
          %v870 = vmul.f32 %v862, %v866
          %v871 = vmul.f32 %v863, %v867
          %v872 = vmul.f32 %v864, %v868
          %v873 = vmul.f32 %v865, %v869
          %s874 = scalar_lea.vmem [#allocation8], 256
          %v875 = vld [vmem:[%s874] sm:$0xff]
          %v876 = vld [vmem:[%s874 + $0x8] sm:$0xff]
          %v877 = vld [vmem:[%s874 + $0x10] sm:$0xff]
          %v878 = vld [vmem:[%s874 + $0x18] sm:$0xff]
          %v879 = vld [vmem:[%s874 + $0x20] sm:$0xff]
          %v880 = vld [vmem:[%s874 + $0x28] sm:$0xff]
          %v881 = vld [vmem:[%s874 + $0x30] sm:$0xff]
          %v882 = vld [vmem:[%s874 + $0x38] sm:$0xff]
          %v883 = vld [vmem:[%s874 + $0x40] sm:$0xff]
          %v884 = vld [vmem:[%s874 + $0x48] sm:$0xff]
          %v885 = vld [vmem:[%s874 + $0x50] sm:$0xff]
          %v886 = vld [vmem:[%s874 + $0x58] sm:$0xff]
          %v887 = vld [vmem:[%s874 + $0x60] sm:$0xff]
          %v888 = vld [vmem:[%s874 + $0x68] sm:$0xff]
          %v889 = vld [vmem:[%s874 + $0x70] sm:$0xff]
          %v890 = vld [vmem:[%s874 + $0x78] sm:$0xff]
          %v891 = vld [vmem:[%s874 + $0x80] sm:$0xff]
          %v892 = vld [vmem:[%s874 + $0x88] sm:$0xff]
          %v893 = vld [vmem:[%s874 + $0x90] sm:$0xff]
          %v894 = vld [vmem:[%s874 + $0x98] sm:$0xff]
          %v895 = vld [vmem:[%s874 + $0xa0] sm:$0xff]
          %v896 = vld [vmem:[%s874 + $0xa8] sm:$0xff]
          %v897 = vld [vmem:[%s874 + $0xb0] sm:$0xff]
          %v898 = vld [vmem:[%s874 + $0xb8] sm:$0xff]
          %v899 = vld [vmem:[%s874 + $0xc0] sm:$0xff]
          %v900 = vld [vmem:[%s874 + $0xc8] sm:$0xff]
          %v901 = vld [vmem:[%s874 + $0xd0] sm:$0xff]
          %v902 = vld [vmem:[%s874 + $0xd8] sm:$0xff]
          %v903 = vld [vmem:[%s874 + $0xe0] sm:$0xff]
          %v904 = vld [vmem:[%s874 + $0xe8] sm:$0xff]
          %v905 = vld [vmem:[%s874 + $0xf0] sm:$0xff]
          %v906 = vld [vmem:[%s874 + $0xf8] sm:$0xff]
          %v907 = vpack.c.bf16 %v872, %v870
          %v908 = vpack.c.bf16 %v873, %v871
          %v909 = vlaneseq
          %v910 = vshrl.u32 %v909, 7
          %v911 = vsub.s32 2, %v910
          %v912 = vrot.slane %v587, %v911
          %v913 = vlaneseq
          %v914 = vshrl.u32 %v913, 7
          %v915 = vsub.s32 2, %v914
          %v916 = vrot.slane %v588, %v915
          %v949 = vunpack.c.l.b16 %v875
          %v950 = vunpack.c.h.b16 %v875
          %v951 = vunpack.c.l.b16 %v876
          %v952 = vunpack.c.h.b16 %v876
          %v953 = vunpack.c.l.b16 %v877
          %v954 = vunpack.c.h.b16 %v877
          %v955 = vunpack.c.l.b16 %v878
          %v956 = vunpack.c.h.b16 %v878
          %v957 = vunpack.c.l.b16 %v879
          %v958 = vunpack.c.h.b16 %v879
          %v959 = vunpack.c.l.b16 %v880
          %v960 = vunpack.c.h.b16 %v880
          %v961 = vunpack.c.l.b16 %v881
          %v962 = vunpack.c.h.b16 %v881
          %v963 = vunpack.c.l.b16 %v882
          %v964 = vunpack.c.h.b16 %v882
          %v965 = vunpack.c.l.b16 %v883
          %v966 = vunpack.c.h.b16 %v883
          %v967 = vunpack.c.l.b16 %v884
          %v968 = vunpack.c.h.b16 %v884
          %v969 = vunpack.c.l.b16 %v885
          %v970 = vunpack.c.h.b16 %v885
          %v971 = vunpack.c.l.b16 %v886
          %v972 = vunpack.c.h.b16 %v886
          %v973 = vunpack.c.l.b16 %v887
          %v974 = vunpack.c.h.b16 %v887
          %v975 = vunpack.c.l.b16 %v888
          %v976 = vunpack.c.h.b16 %v888
          %v977 = vunpack.c.l.b16 %v889
          %v978 = vunpack.c.h.b16 %v889
          %v979 = vunpack.c.l.b16 %v890
          %v980 = vunpack.c.h.b16 %v890
          %v981 = vunpack.c.l.b16 %v891
          %v982 = vunpack.c.h.b16 %v891
          %v983 = vunpack.c.l.b16 %v892
          %v984 = vunpack.c.h.b16 %v892
          %v985 = vunpack.c.l.b16 %v893
          %v986 = vunpack.c.h.b16 %v893
          %v987 = vunpack.c.l.b16 %v894
          %v988 = vunpack.c.h.b16 %v894
          %v989 = vunpack.c.l.b16 %v895
          %v990 = vunpack.c.h.b16 %v895
          %v991 = vunpack.c.l.b16 %v896
          %v992 = vunpack.c.h.b16 %v896
          %v993 = vunpack.c.l.b16 %v897
          %v994 = vunpack.c.h.b16 %v897
          %v995 = vunpack.c.l.b16 %v898
          %v996 = vunpack.c.h.b16 %v898
          %v997 = vunpack.c.l.b16 %v899
          %v998 = vunpack.c.h.b16 %v899
          %v999 = vunpack.c.l.b16 %v900
          %v1000 = vunpack.c.h.b16 %v900
          %v1001 = vunpack.c.l.b16 %v901
          %v1002 = vunpack.c.h.b16 %v901
          %v1003 = vunpack.c.l.b16 %v902
          %v1004 = vunpack.c.h.b16 %v902
          %v1005 = vunpack.c.l.b16 %v903
          %v1006 = vunpack.c.h.b16 %v903
          %v1007 = vunpack.c.l.b16 %v904
          %v1008 = vunpack.c.h.b16 %v904
          %v1009 = vunpack.c.l.b16 %v905
          %v1010 = vunpack.c.h.b16 %v905
          %v1011 = vunpack.c.l.b16 %v906
          %v1012 = vunpack.c.h.b16 %v906
          %v1013 = vpack.c.b16 %v951, %v949
          %v1014 = vpack.c.b16 %v952, %v950
          %v1015 = vpack.c.b16 %v955, %v953
          %v1016 = vpack.c.b16 %v956, %v954
          %v1017 = vpack.c.b16 %v959, %v957
          %v1018 = vpack.c.b16 %v960, %v958
          %v1019 = vpack.c.b16 %v963, %v961
          %v1020 = vpack.c.b16 %v964, %v962
          %v1021 = vpack.c.b16 %v967, %v965
          %v1022 = vpack.c.b16 %v968, %v966
          %v1023 = vpack.c.b16 %v971, %v969
          %v1024 = vpack.c.b16 %v972, %v970
          %v1025 = vpack.c.b16 %v975, %v973
          %v1026 = vpack.c.b16 %v976, %v974
          %v1027 = vpack.c.b16 %v979, %v977
          %v1028 = vpack.c.b16 %v980, %v978
          %v1029 = vpack.c.b16 %v983, %v981
          %v1030 = vpack.c.b16 %v984, %v982
          %v1031 = vpack.c.b16 %v987, %v985
          %v1032 = vpack.c.b16 %v988, %v986
          %v1033 = vpack.c.b16 %v991, %v989
          %v1034 = vpack.c.b16 %v992, %v990
          %v1035 = vpack.c.b16 %v995, %v993
          %v1036 = vpack.c.b16 %v996, %v994
          %v1037 = vpack.c.b16 %v999, %v997
          %v1038 = vpack.c.b16 %v1000, %v998
          %v1039 = vpack.c.b16 %v1003, %v1001
          %v1040 = vpack.c.b16 %v1004, %v1002
          %v1041 = vpack.c.b16 %v1007, %v1005
          %v1042 = vpack.c.b16 %v1008, %v1006
          %v1043 = vpack.c.b16 %v1011, %v1009
          %v1044 = vpack.c.b16 %v1012, %v1010
          %1077 = vmatprep.subr.bf16.mxu0 %v1028
          %1078 = vmatpush1.bf16.msra.mxu0 %v1027
          %1079 = vmatprep.subr.bf16.mxu0 %v1026
          %1080 = vmatpush1.bf16.msra.mxu0 %v1025
          %1081 = vmatprep.subr.bf16.mxu0 %v1024
          %1082 = vmatpush1.bf16.msra.mxu0 %v1023
          %1083 = vmatprep.subr.bf16.mxu0 %v1022
          %1084 = vmatpush1.bf16.msra.mxu0 %v1021
          %1085 = vmatprep.subr.bf16.mxu0 %v1020
          %1086 = vmatpush1.bf16.msra.mxu0 %v1019
          %1087 = vmatprep.subr.bf16.mxu0 %v1018
          %1088 = vmatpush1.bf16.msra.mxu0 %v1017
          %1089 = vmatprep.subr.bf16.mxu0 %v1016
          %1090 = vmatpush1.bf16.msra.mxu0 %v1015
          %1091 = vmatprep.subr.bf16.mxu0 %v1014
          %1092 = vmatpush1.bf16.msra.mxu0 %v1013
          %1093 = vmatprep.subr.bf16.mxu0 %v1044
          %1094 = vmatpush2.bf16.msra.mxu0 %v1043
          %1095 = vmatprep.subr.bf16.mxu0 %v1042
          %1096 = vmatpush2.bf16.msra.mxu0 %v1041
          %1097 = vmatprep.subr.bf16.mxu0 %v1040
          %1098 = vmatpush2.bf16.msra.mxu0 %v1039
          %1099 = vmatprep.subr.bf16.mxu0 %v1038
          %1100 = vmatpush2.bf16.msra.mxu0 %v1037
          %1101 = vmatprep.subr.bf16.mxu0 %v1036
          %1102 = vmatpush2.bf16.msra.mxu0 %v1035
          %1103 = vmatprep.subr.bf16.mxu0 %v1034
          %1104 = vmatpush2.bf16.msra.mxu0 %v1033
          %1105 = vmatprep.subr.bf16.mxu0 %v1032
          %1106 = vmatpush2.bf16.msra.mxu0 %v1031
          %1107 = vmatprep.subr.bf16.mxu0 %v1030
          %1108 = vmatpush2.bf16.msra.mxu0 %v1029
          %1109 = vmatprep.mubr.bf16.mxu0 %v908
          %1110 = vmatmul.mubr.bf16.gmra.mxu0 %v907
          %v1111 = vpop.f32.mrf.mxu0
          %v1112 = vadd.f32 %v912, %v1111
          %v1113 = vpop.f32.mrf.mxu0
          %v1114 = vadd.f32 %v916, %v1113
          %v1115 = vpop.f32.mrf.mxu0
          %v1116 = vadd.f32 %v912, %v1115
          %v1117 = vpop.f32.mrf.mxu0
          %v1118 = vadd.f32 %v916, %v1117
          %1119 = vdwg.mxu0
          %v1120 = vmul.f32 %v870, %v1112
          %v1121 = vmul.f32 %v871, %v1114
          %v1122 = vmul.f32 %v872, %v1116
          %v1123 = vmul.f32 %v873, %v1118
          %s1124 = scalar_lea.vmem [#allocation8], 512
          %v1125 = vld [vmem:[%s1124] sm:$0xff]
          %v1126 = vld [vmem:[%s1124 + $0x8] sm:$0xff]
          %v1127 = vld [vmem:[%s1124 + $0x10] sm:$0xff]
          %v1128 = vld [vmem:[%s1124 + $0x18] sm:$0xff]
          %v1129 = vld [vmem:[%s1124 + $0x20] sm:$0xff]
          %v1130 = vld [vmem:[%s1124 + $0x28] sm:$0xff]
          %v1131 = vld [vmem:[%s1124 + $0x30] sm:$0xff]
          %v1132 = vld [vmem:[%s1124 + $0x38] sm:$0xff]
          %v1133 = vld [vmem:[%s1124 + $0x40] sm:$0xff]
          %v1134 = vld [vmem:[%s1124 + $0x48] sm:$0xff]
          %v1135 = vld [vmem:[%s1124 + $0x50] sm:$0xff]
          %v1136 = vld [vmem:[%s1124 + $0x58] sm:$0xff]
          %v1137 = vld [vmem:[%s1124 + $0x60] sm:$0xff]
          %v1138 = vld [vmem:[%s1124 + $0x68] sm:$0xff]
          %v1139 = vld [vmem:[%s1124 + $0x70] sm:$0xff]
          %v1140 = vld [vmem:[%s1124 + $0x78] sm:$0xff]
          %v1141 = vld [vmem:[%s1124 + $0x80] sm:$0xff]
          %v1142 = vld [vmem:[%s1124 + $0x88] sm:$0xff]
          %v1143 = vld [vmem:[%s1124 + $0x90] sm:$0xff]
          %v1144 = vld [vmem:[%s1124 + $0x98] sm:$0xff]
          %v1145 = vld [vmem:[%s1124 + $0xa0] sm:$0xff]
          %v1146 = vld [vmem:[%s1124 + $0xa8] sm:$0xff]
          %v1147 = vld [vmem:[%s1124 + $0xb0] sm:$0xff]
          %v1148 = vld [vmem:[%s1124 + $0xb8] sm:$0xff]
          %v1149 = vld [vmem:[%s1124 + $0xc0] sm:$0xff]
          %v1150 = vld [vmem:[%s1124 + $0xc8] sm:$0xff]
          %v1151 = vld [vmem:[%s1124 + $0xd0] sm:$0xff]
          %v1152 = vld [vmem:[%s1124 + $0xd8] sm:$0xff]
          %v1153 = vld [vmem:[%s1124 + $0xe0] sm:$0xff]
          %v1154 = vld [vmem:[%s1124 + $0xe8] sm:$0xff]
          %v1155 = vld [vmem:[%s1124 + $0xf0] sm:$0xff]
          %v1156 = vld [vmem:[%s1124 + $0xf8] sm:$0xff]
          %v1157 = vpack.c.bf16 %v1122, %v1120
          %v1158 = vpack.c.bf16 %v1123, %v1121
          %v1159 = vlaneseq
          %v1160 = vshrl.u32 %v1159, 7
          %v1161 = vsub.s32 3, %v1160
          %v1162 = vrot.slane %v587, %v1161
          %v1163 = vlaneseq
          %v1164 = vshrl.u32 %v1163, 7
          %v1165 = vsub.s32 3, %v1164
          %v1166 = vrot.slane %v588, %v1165
          %v1199 = vunpack.c.l.b16 %v1125
          %v1200 = vunpack.c.h.b16 %v1125
          %v1201 = vunpack.c.l.b16 %v1126
          %v1202 = vunpack.c.h.b16 %v1126
          %v1203 = vunpack.c.l.b16 %v1127
          %v1204 = vunpack.c.h.b16 %v1127
          %v1205 = vunpack.c.l.b16 %v1128
          %v1206 = vunpack.c.h.b16 %v1128
          %v1207 = vunpack.c.l.b16 %v1129
          %v1208 = vunpack.c.h.b16 %v1129
          %v1209 = vunpack.c.l.b16 %v1130
          %v1210 = vunpack.c.h.b16 %v1130
          %v1211 = vunpack.c.l.b16 %v1131
          %v1212 = vunpack.c.h.b16 %v1131
          %v1213 = vunpack.c.l.b16 %v1132
          %v1214 = vunpack.c.h.b16 %v1132
          %v1215 = vunpack.c.l.b16 %v1133
          %v1216 = vunpack.c.h.b16 %v1133
          %v1217 = vunpack.c.l.b16 %v1134
          %v1218 = vunpack.c.h.b16 %v1134
          %v1219 = vunpack.c.l.b16 %v1135
          %v1220 = vunpack.c.h.b16 %v1135
          %v1221 = vunpack.c.l.b16 %v1136
          %v1222 = vunpack.c.h.b16 %v1136
          %v1223 = vunpack.c.l.b16 %v1137
          %v1224 = vunpack.c.h.b16 %v1137
          %v1225 = vunpack.c.l.b16 %v1138
          %v1226 = vunpack.c.h.b16 %v1138
          %v1227 = vunpack.c.l.b16 %v1139
          %v1228 = vunpack.c.h.b16 %v1139
          %v1229 = vunpack.c.l.b16 %v1140
          %v1230 = vunpack.c.h.b16 %v1140
          %v1231 = vunpack.c.l.b16 %v1141
          %v1232 = vunpack.c.h.b16 %v1141
          %v1233 = vunpack.c.l.b16 %v1142
          %v1234 = vunpack.c.h.b16 %v1142
          %v1235 = vunpack.c.l.b16 %v1143
          %v1236 = vunpack.c.h.b16 %v1143
          %v1237 = vunpack.c.l.b16 %v1144
          %v1238 = vunpack.c.h.b16 %v1144
          %v1239 = vunpack.c.l.b16 %v1145
          %v1240 = vunpack.c.h.b16 %v1145
          %v1241 = vunpack.c.l.b16 %v1146
          %v1242 = vunpack.c.h.b16 %v1146
          %v1243 = vunpack.c.l.b16 %v1147
          %v1244 = vunpack.c.h.b16 %v1147
          %v1245 = vunpack.c.l.b16 %v1148
          %v1246 = vunpack.c.h.b16 %v1148
          %v1247 = vunpack.c.l.b16 %v1149
          %v1248 = vunpack.c.h.b16 %v1149
          %v1249 = vunpack.c.l.b16 %v1150
          %v1250 = vunpack.c.h.b16 %v1150
          %v1251 = vunpack.c.l.b16 %v1151
          %v1252 = vunpack.c.h.b16 %v1151
          %v1253 = vunpack.c.l.b16 %v1152
          %v1254 = vunpack.c.h.b16 %v1152
          %v1255 = vunpack.c.l.b16 %v1153
          %v1256 = vunpack.c.h.b16 %v1153
          %v1257 = vunpack.c.l.b16 %v1154
          %v1258 = vunpack.c.h.b16 %v1154
          %v1259 = vunpack.c.l.b16 %v1155
          %v1260 = vunpack.c.h.b16 %v1155
          %v1261 = vunpack.c.l.b16 %v1156
          %v1262 = vunpack.c.h.b16 %v1156
          %v1263 = vpack.c.b16 %v1201, %v1199
          %v1264 = vpack.c.b16 %v1202, %v1200
          %v1265 = vpack.c.b16 %v1205, %v1203
          %v1266 = vpack.c.b16 %v1206, %v1204
          %v1267 = vpack.c.b16 %v1209, %v1207
          %v1268 = vpack.c.b16 %v1210, %v1208
          %v1269 = vpack.c.b16 %v1213, %v1211
          %v1270 = vpack.c.b16 %v1214, %v1212
          %v1271 = vpack.c.b16 %v1217, %v1215
          %v1272 = vpack.c.b16 %v1218, %v1216
          %v1273 = vpack.c.b16 %v1221, %v1219
          %v1274 = vpack.c.b16 %v1222, %v1220
          %v1275 = vpack.c.b16 %v1225, %v1223
          %v1276 = vpack.c.b16 %v1226, %v1224
          %v1277 = vpack.c.b16 %v1229, %v1227
          %v1278 = vpack.c.b16 %v1230, %v1228
          %v1279 = vpack.c.b16 %v1233, %v1231
          %v1280 = vpack.c.b16 %v1234, %v1232
          %v1281 = vpack.c.b16 %v1237, %v1235
          %v1282 = vpack.c.b16 %v1238, %v1236
          %v1283 = vpack.c.b16 %v1241, %v1239
          %v1284 = vpack.c.b16 %v1242, %v1240
          %v1285 = vpack.c.b16 %v1245, %v1243
          %v1286 = vpack.c.b16 %v1246, %v1244
          %v1287 = vpack.c.b16 %v1249, %v1247
          %v1288 = vpack.c.b16 %v1250, %v1248
          %v1289 = vpack.c.b16 %v1253, %v1251
          %v1290 = vpack.c.b16 %v1254, %v1252
          %v1291 = vpack.c.b16 %v1257, %v1255
          %v1292 = vpack.c.b16 %v1258, %v1256
          %v1293 = vpack.c.b16 %v1261, %v1259
          %v1294 = vpack.c.b16 %v1262, %v1260
          %1327 = vmatprep.subr.bf16.mxu0 %v1278
          %1328 = vmatpush1.bf16.msra.mxu0 %v1277
          %1329 = vmatprep.subr.bf16.mxu0 %v1276
          %1330 = vmatpush1.bf16.msra.mxu0 %v1275
          %1331 = vmatprep.subr.bf16.mxu0 %v1274
          %1332 = vmatpush1.bf16.msra.mxu0 %v1273
          %1333 = vmatprep.subr.bf16.mxu0 %v1272
          %1334 = vmatpush1.bf16.msra.mxu0 %v1271
          %1335 = vmatprep.subr.bf16.mxu0 %v1270
          %1336 = vmatpush1.bf16.msra.mxu0 %v1269
          %1337 = vmatprep.subr.bf16.mxu0 %v1268
          %1338 = vmatpush1.bf16.msra.mxu0 %v1267
          %1339 = vmatprep.subr.bf16.mxu0 %v1266
          %1340 = vmatpush1.bf16.msra.mxu0 %v1265
          %1341 = vmatprep.subr.bf16.mxu0 %v1264
          %1342 = vmatpush1.bf16.msra.mxu0 %v1263
          %1343 = vmatprep.subr.bf16.mxu0 %v1294
          %1344 = vmatpush2.bf16.msra.mxu0 %v1293
          %1345 = vmatprep.subr.bf16.mxu0 %v1292
          %1346 = vmatpush2.bf16.msra.mxu0 %v1291
          %1347 = vmatprep.subr.bf16.mxu0 %v1290
          %1348 = vmatpush2.bf16.msra.mxu0 %v1289
          %1349 = vmatprep.subr.bf16.mxu0 %v1288
          %1350 = vmatpush2.bf16.msra.mxu0 %v1287
          %1351 = vmatprep.subr.bf16.mxu0 %v1286
          %1352 = vmatpush2.bf16.msra.mxu0 %v1285
          %1353 = vmatprep.subr.bf16.mxu0 %v1284
          %1354 = vmatpush2.bf16.msra.mxu0 %v1283
          %1355 = vmatprep.subr.bf16.mxu0 %v1282
          %1356 = vmatpush2.bf16.msra.mxu0 %v1281
          %1357 = vmatprep.subr.bf16.mxu0 %v1280
          %1358 = vmatpush2.bf16.msra.mxu0 %v1279
          %1359 = vmatprep.mubr.bf16.mxu0 %v1158
          %1360 = vmatmul.mubr.bf16.gmra.mxu0 %v1157
          %v1361 = vpop.f32.mrf.mxu0
          %v1362 = vadd.f32 %v1162, %v1361
          %v1363 = vpop.f32.mrf.mxu0
          %v1364 = vadd.f32 %v1166, %v1363
          %v1365 = vpop.f32.mrf.mxu0
          %v1366 = vadd.f32 %v1162, %v1365
          %v1367 = vpop.f32.mrf.mxu0
          %v1368 = vadd.f32 %v1166, %v1367
          %1369 = vdwg.mxu0
          %v1370 = vmul.f32 %v1120, %v1362
          %v1371 = vmul.f32 %v1121, %v1364
          %v1372 = vmul.f32 %v1122, %v1366
          %v1373 = vmul.f32 %v1123, %v1368
          %s1374 = scalar_lea.vmem [#allocation8], 768
          %v1375 = vld [vmem:[%s1374] sm:$0xff]
          %v1376 = vld [vmem:[%s1374 + $0x8] sm:$0xff]
          %v1377 = vld [vmem:[%s1374 + $0x10] sm:$0xff]
          %v1378 = vld [vmem:[%s1374 + $0x18] sm:$0xff]
          %v1379 = vld [vmem:[%s1374 + $0x20] sm:$0xff]
          %v1380 = vld [vmem:[%s1374 + $0x28] sm:$0xff]
          %v1381 = vld [vmem:[%s1374 + $0x30] sm:$0xff]
          %v1382 = vld [vmem:[%s1374 + $0x38] sm:$0xff]
          %v1383 = vld [vmem:[%s1374 + $0x40] sm:$0xff]
          %v1384 = vld [vmem:[%s1374 + $0x48] sm:$0xff]
          %v1385 = vld [vmem:[%s1374 + $0x50] sm:$0xff]
          %v1386 = vld [vmem:[%s1374 + $0x58] sm:$0xff]
          %v1387 = vld [vmem:[%s1374 + $0x60] sm:$0xff]
          %v1388 = vld [vmem:[%s1374 + $0x68] sm:$0xff]
          %v1389 = vld [vmem:[%s1374 + $0x70] sm:$0xff]
          %v1390 = vld [vmem:[%s1374 + $0x78] sm:$0xff]
          %v1391 = vld [vmem:[%s1374 + $0x80] sm:$0xff]
          %v1392 = vld [vmem:[%s1374 + $0x88] sm:$0xff]
          %v1393 = vld [vmem:[%s1374 + $0x90] sm:$0xff]
          %v1394 = vld [vmem:[%s1374 + $0x98] sm:$0xff]
          %v1395 = vld [vmem:[%s1374 + $0xa0] sm:$0xff]
          %v1396 = vld [vmem:[%s1374 + $0xa8] sm:$0xff]
          %v1397 = vld [vmem:[%s1374 + $0xb0] sm:$0xff]
          %v1398 = vld [vmem:[%s1374 + $0xb8] sm:$0xff]
          %v1399 = vld [vmem:[%s1374 + $0xc0] sm:$0xff]
          %v1400 = vld [vmem:[%s1374 + $0xc8] sm:$0xff]
          %v1401 = vld [vmem:[%s1374 + $0xd0] sm:$0xff]
          %v1402 = vld [vmem:[%s1374 + $0xd8] sm:$0xff]
          %v1403 = vld [vmem:[%s1374 + $0xe0] sm:$0xff]
          %v1404 = vld [vmem:[%s1374 + $0xe8] sm:$0xff]
          %v1405 = vld [vmem:[%s1374 + $0xf0] sm:$0xff]
          %v1406 = vld [vmem:[%s1374 + $0xf8] sm:$0xff]
          %v1407 = vpack.c.bf16 %v1372, %v1370
          %v1408 = vpack.c.bf16 %v1373, %v1371
          %v1409 = vlaneseq
          %v1410 = vshrl.u32 %v1409, 7
          %v1411 = vsub.s32 4, %v1410
          %v1412 = vrot.slane %v587, %v1411
          %v1413 = vlaneseq
          %v1414 = vshrl.u32 %v1413, 7
          %v1415 = vsub.s32 4, %v1414
          %v1416 = vrot.slane %v588, %v1415
          %v1449 = vunpack.c.l.b16 %v1375
          %v1450 = vunpack.c.h.b16 %v1375
          %v1451 = vunpack.c.l.b16 %v1376
          %v1452 = vunpack.c.h.b16 %v1376
          %v1453 = vunpack.c.l.b16 %v1377
          %v1454 = vunpack.c.h.b16 %v1377
          %v1455 = vunpack.c.l.b16 %v1378
          %v1456 = vunpack.c.h.b16 %v1378
          %v1457 = vunpack.c.l.b16 %v1379
          %v1458 = vunpack.c.h.b16 %v1379
          %v1459 = vunpack.c.l.b16 %v1380
          %v1460 = vunpack.c.h.b16 %v1380
          %v1461 = vunpack.c.l.b16 %v1381
          %v1462 = vunpack.c.h.b16 %v1381
          %v1463 = vunpack.c.l.b16 %v1382
          %v1464 = vunpack.c.h.b16 %v1382
          %v1465 = vunpack.c.l.b16 %v1383
          %v1466 = vunpack.c.h.b16 %v1383
          %v1467 = vunpack.c.l.b16 %v1384
          %v1468 = vunpack.c.h.b16 %v1384
          %v1469 = vunpack.c.l.b16 %v1385
          %v1470 = vunpack.c.h.b16 %v1385
          %v1471 = vunpack.c.l.b16 %v1386
          %v1472 = vunpack.c.h.b16 %v1386
          %v1473 = vunpack.c.l.b16 %v1387
          %v1474 = vunpack.c.h.b16 %v1387
          %v1475 = vunpack.c.l.b16 %v1388
          %v1476 = vunpack.c.h.b16 %v1388
          %v1477 = vunpack.c.l.b16 %v1389
          %v1478 = vunpack.c.h.b16 %v1389
          %v1479 = vunpack.c.l.b16 %v1390
          %v1480 = vunpack.c.h.b16 %v1390
          %v1481 = vunpack.c.l.b16 %v1391
          %v1482 = vunpack.c.h.b16 %v1391
          %v1483 = vunpack.c.l.b16 %v1392
          %v1484 = vunpack.c.h.b16 %v1392
          %v1485 = vunpack.c.l.b16 %v1393
          %v1486 = vunpack.c.h.b16 %v1393
          %v1487 = vunpack.c.l.b16 %v1394
          %v1488 = vunpack.c.h.b16 %v1394
          %v1489 = vunpack.c.l.b16 %v1395
          %v1490 = vunpack.c.h.b16 %v1395
          %v1491 = vunpack.c.l.b16 %v1396
          %v1492 = vunpack.c.h.b16 %v1396
          %v1493 = vunpack.c.l.b16 %v1397
          %v1494 = vunpack.c.h.b16 %v1397
          %v1495 = vunpack.c.l.b16 %v1398
          %v1496 = vunpack.c.h.b16 %v1398
          %v1497 = vunpack.c.l.b16 %v1399
          %v1498 = vunpack.c.h.b16 %v1399
          %v1499 = vunpack.c.l.b16 %v1400
          %v1500 = vunpack.c.h.b16 %v1400
          %v1501 = vunpack.c.l.b16 %v1401
          %v1502 = vunpack.c.h.b16 %v1401
          %v1503 = vunpack.c.l.b16 %v1402
          %v1504 = vunpack.c.h.b16 %v1402
          %v1505 = vunpack.c.l.b16 %v1403
          %v1506 = vunpack.c.h.b16 %v1403
          %v1507 = vunpack.c.l.b16 %v1404
          %v1508 = vunpack.c.h.b16 %v1404
          %v1509 = vunpack.c.l.b16 %v1405
          %v1510 = vunpack.c.h.b16 %v1405
          %v1511 = vunpack.c.l.b16 %v1406
          %v1512 = vunpack.c.h.b16 %v1406
          %v1513 = vpack.c.b16 %v1451, %v1449
          %v1514 = vpack.c.b16 %v1452, %v1450
          %v1515 = vpack.c.b16 %v1455, %v1453
          %v1516 = vpack.c.b16 %v1456, %v1454
          %v1517 = vpack.c.b16 %v1459, %v1457
          %v1518 = vpack.c.b16 %v1460, %v1458
          %v1519 = vpack.c.b16 %v1463, %v1461
          %v1520 = vpack.c.b16 %v1464, %v1462
          %v1521 = vpack.c.b16 %v1467, %v1465
          %v1522 = vpack.c.b16 %v1468, %v1466
          %v1523 = vpack.c.b16 %v1471, %v1469
          %v1524 = vpack.c.b16 %v1472, %v1470
          %v1525 = vpack.c.b16 %v1475, %v1473
          %v1526 = vpack.c.b16 %v1476, %v1474
          %v1527 = vpack.c.b16 %v1479, %v1477
          %v1528 = vpack.c.b16 %v1480, %v1478
          %v1529 = vpack.c.b16 %v1483, %v1481
          %v1530 = vpack.c.b16 %v1484, %v1482
          %v1531 = vpack.c.b16 %v1487, %v1485
          %v1532 = vpack.c.b16 %v1488, %v1486
          %v1533 = vpack.c.b16 %v1491, %v1489
          %v1534 = vpack.c.b16 %v1492, %v1490
          %v1535 = vpack.c.b16 %v1495, %v1493
          %v1536 = vpack.c.b16 %v1496, %v1494
          %v1537 = vpack.c.b16 %v1499, %v1497
          %v1538 = vpack.c.b16 %v1500, %v1498
          %v1539 = vpack.c.b16 %v1503, %v1501
          %v1540 = vpack.c.b16 %v1504, %v1502
          %v1541 = vpack.c.b16 %v1507, %v1505
          %v1542 = vpack.c.b16 %v1508, %v1506
          %v1543 = vpack.c.b16 %v1511, %v1509
          %v1544 = vpack.c.b16 %v1512, %v1510
          %1577 = vmatprep.subr.bf16.mxu0 %v1528
          %1578 = vmatpush1.bf16.msra.mxu0 %v1527
          %1579 = vmatprep.subr.bf16.mxu0 %v1526
          %1580 = vmatpush1.bf16.msra.mxu0 %v1525
          %1581 = vmatprep.subr.bf16.mxu0 %v1524
          %1582 = vmatpush1.bf16.msra.mxu0 %v1523
          %1583 = vmatprep.subr.bf16.mxu0 %v1522
          %1584 = vmatpush1.bf16.msra.mxu0 %v1521
          %1585 = vmatprep.subr.bf16.mxu0 %v1520
          %1586 = vmatpush1.bf16.msra.mxu0 %v1519
          %1587 = vmatprep.subr.bf16.mxu0 %v1518
          %1588 = vmatpush1.bf16.msra.mxu0 %v1517
          %1589 = vmatprep.subr.bf16.mxu0 %v1516
          %1590 = vmatpush1.bf16.msra.mxu0 %v1515
          %1591 = vmatprep.subr.bf16.mxu0 %v1514
          %1592 = vmatpush1.bf16.msra.mxu0 %v1513
          %1593 = vmatprep.subr.bf16.mxu0 %v1544
          %1594 = vmatpush2.bf16.msra.mxu0 %v1543
          %1595 = vmatprep.subr.bf16.mxu0 %v1542
          %1596 = vmatpush2.bf16.msra.mxu0 %v1541
          %1597 = vmatprep.subr.bf16.mxu0 %v1540
          %1598 = vmatpush2.bf16.msra.mxu0 %v1539
          %1599 = vmatprep.subr.bf16.mxu0 %v1538
          %1600 = vmatpush2.bf16.msra.mxu0 %v1537
          %1601 = vmatprep.subr.bf16.mxu0 %v1536
          %1602 = vmatpush2.bf16.msra.mxu0 %v1535
          %1603 = vmatprep.subr.bf16.mxu0 %v1534
          %1604 = vmatpush2.bf16.msra.mxu0 %v1533
          %1605 = vmatprep.subr.bf16.mxu0 %v1532
          %1606 = vmatpush2.bf16.msra.mxu0 %v1531
          %1607 = vmatprep.subr.bf16.mxu0 %v1530
          %1608 = vmatpush2.bf16.msra.mxu0 %v1529
          %1609 = vmatprep.mubr.bf16.mxu0 %v1408
          %1610 = vmatmul.mubr.bf16.gmra.mxu0 %v1407
          %v1611 = vpop.f32.mrf.mxu0
          %v1612 = vadd.f32 %v1412, %v1611
          %v1613 = vpop.f32.mrf.mxu0
          %v1614 = vadd.f32 %v1416, %v1613
          %v1615 = vpop.f32.mrf.mxu0
          %v1616 = vadd.f32 %v1412, %v1615
          %v1617 = vpop.f32.mrf.mxu0
          %v1618 = vadd.f32 %v1416, %v1617
          %1619 = vdwg.mxu0
          %v1620 = vmul.f32 %v1370, %v1612
          %v1621 = vmul.f32 %v1371, %v1614
          %v1622 = vmul.f32 %v1372, %v1616
          %v1623 = vmul.f32 %v1373, %v1618
          %s1624 = scalar_lea.vmem [#allocation8], 1024
          %v1625 = vld [vmem:[%s1624] sm:$0xff]
          %v1626 = vld [vmem:[%s1624 + $0x8] sm:$0xff]
          %v1627 = vld [vmem:[%s1624 + $0x10] sm:$0xff]
          %v1628 = vld [vmem:[%s1624 + $0x18] sm:$0xff]
          %v1629 = vld [vmem:[%s1624 + $0x20] sm:$0xff]
          %v1630 = vld [vmem:[%s1624 + $0x28] sm:$0xff]
          %v1631 = vld [vmem:[%s1624 + $0x30] sm:$0xff]
          %v1632 = vld [vmem:[%s1624 + $0x38] sm:$0xff]
          %v1633 = vld [vmem:[%s1624 + $0x40] sm:$0xff]
          %v1634 = vld [vmem:[%s1624 + $0x48] sm:$0xff]
          %v1635 = vld [vmem:[%s1624 + $0x50] sm:$0xff]
          %v1636 = vld [vmem:[%s1624 + $0x58] sm:$0xff]
          %v1637 = vld [vmem:[%s1624 + $0x60] sm:$0xff]
          %v1638 = vld [vmem:[%s1624 + $0x68] sm:$0xff]
          %v1639 = vld [vmem:[%s1624 + $0x70] sm:$0xff]
          %v1640 = vld [vmem:[%s1624 + $0x78] sm:$0xff]
          %v1641 = vld [vmem:[%s1624 + $0x80] sm:$0xff]
          %v1642 = vld [vmem:[%s1624 + $0x88] sm:$0xff]
          %v1643 = vld [vmem:[%s1624 + $0x90] sm:$0xff]
          %v1644 = vld [vmem:[%s1624 + $0x98] sm:$0xff]
          %v1645 = vld [vmem:[%s1624 + $0xa0] sm:$0xff]
          %v1646 = vld [vmem:[%s1624 + $0xa8] sm:$0xff]
          %v1647 = vld [vmem:[%s1624 + $0xb0] sm:$0xff]
          %v1648 = vld [vmem:[%s1624 + $0xb8] sm:$0xff]
          %v1649 = vld [vmem:[%s1624 + $0xc0] sm:$0xff]
          %v1650 = vld [vmem:[%s1624 + $0xc8] sm:$0xff]
          %v1651 = vld [vmem:[%s1624 + $0xd0] sm:$0xff]
          %v1652 = vld [vmem:[%s1624 + $0xd8] sm:$0xff]
          %v1653 = vld [vmem:[%s1624 + $0xe0] sm:$0xff]
          %v1654 = vld [vmem:[%s1624 + $0xe8] sm:$0xff]
          %v1655 = vld [vmem:[%s1624 + $0xf0] sm:$0xff]
          %v1656 = vld [vmem:[%s1624 + $0xf8] sm:$0xff]
          %v1657 = vpack.c.bf16 %v1622, %v1620
          %v1658 = vpack.c.bf16 %v1623, %v1621
          %v1659 = vlaneseq
          %v1660 = vshrl.u32 %v1659, 7
          %v1661 = vsub.s32 5, %v1660
          %v1662 = vrot.slane %v587, %v1661
          %v1663 = vlaneseq
          %v1664 = vshrl.u32 %v1663, 7
          %v1665 = vsub.s32 5, %v1664
          %v1666 = vrot.slane %v588, %v1665
          %v1699 = vunpack.c.l.b16 %v1625
          %v1700 = vunpack.c.h.b16 %v1625
          %v1701 = vunpack.c.l.b16 %v1626
          %v1702 = vunpack.c.h.b16 %v1626
          %v1703 = vunpack.c.l.b16 %v1627
          %v1704 = vunpack.c.h.b16 %v1627
          %v1705 = vunpack.c.l.b16 %v1628
          %v1706 = vunpack.c.h.b16 %v1628
          %v1707 = vunpack.c.l.b16 %v1629
          %v1708 = vunpack.c.h.b16 %v1629
          %v1709 = vunpack.c.l.b16 %v1630
          %v1710 = vunpack.c.h.b16 %v1630
          %v1711 = vunpack.c.l.b16 %v1631
          %v1712 = vunpack.c.h.b16 %v1631
          %v1713 = vunpack.c.l.b16 %v1632
          %v1714 = vunpack.c.h.b16 %v1632
          %v1715 = vunpack.c.l.b16 %v1633
          %v1716 = vunpack.c.h.b16 %v1633
          %v1717 = vunpack.c.l.b16 %v1634
          %v1718 = vunpack.c.h.b16 %v1634
          %v1719 = vunpack.c.l.b16 %v1635
          %v1720 = vunpack.c.h.b16 %v1635
          %v1721 = vunpack.c.l.b16 %v1636
          %v1722 = vunpack.c.h.b16 %v1636
          %v1723 = vunpack.c.l.b16 %v1637
          %v1724 = vunpack.c.h.b16 %v1637
          %v1725 = vunpack.c.l.b16 %v1638
          %v1726 = vunpack.c.h.b16 %v1638
          %v1727 = vunpack.c.l.b16 %v1639
          %v1728 = vunpack.c.h.b16 %v1639
          %v1729 = vunpack.c.l.b16 %v1640
          %v1730 = vunpack.c.h.b16 %v1640
          %v1731 = vunpack.c.l.b16 %v1641
          %v1732 = vunpack.c.h.b16 %v1641
          %v1733 = vunpack.c.l.b16 %v1642
          %v1734 = vunpack.c.h.b16 %v1642
          %v1735 = vunpack.c.l.b16 %v1643
          %v1736 = vunpack.c.h.b16 %v1643
          %v1737 = vunpack.c.l.b16 %v1644
          %v1738 = vunpack.c.h.b16 %v1644
          %v1739 = vunpack.c.l.b16 %v1645
          %v1740 = vunpack.c.h.b16 %v1645
          %v1741 = vunpack.c.l.b16 %v1646
          %v1742 = vunpack.c.h.b16 %v1646
          %v1743 = vunpack.c.l.b16 %v1647
          %v1744 = vunpack.c.h.b16 %v1647
          %v1745 = vunpack.c.l.b16 %v1648
          %v1746 = vunpack.c.h.b16 %v1648
          %v1747 = vunpack.c.l.b16 %v1649
          %v1748 = vunpack.c.h.b16 %v1649
          %v1749 = vunpack.c.l.b16 %v1650
          %v1750 = vunpack.c.h.b16 %v1650
          %v1751 = vunpack.c.l.b16 %v1651
          %v1752 = vunpack.c.h.b16 %v1651
          %v1753 = vunpack.c.l.b16 %v1652
          %v1754 = vunpack.c.h.b16 %v1652
          %v1755 = vunpack.c.l.b16 %v1653
          %v1756 = vunpack.c.h.b16 %v1653
          %v1757 = vunpack.c.l.b16 %v1654
          %v1758 = vunpack.c.h.b16 %v1654
          %v1759 = vunpack.c.l.b16 %v1655
          %v1760 = vunpack.c.h.b16 %v1655
          %v1761 = vunpack.c.l.b16 %v1656
          %v1762 = vunpack.c.h.b16 %v1656
          %v1763 = vpack.c.b16 %v1701, %v1699
          %v1764 = vpack.c.b16 %v1702, %v1700
          %v1765 = vpack.c.b16 %v1705, %v1703
          %v1766 = vpack.c.b16 %v1706, %v1704
          %v1767 = vpack.c.b16 %v1709, %v1707
          %v1768 = vpack.c.b16 %v1710, %v1708
          %v1769 = vpack.c.b16 %v1713, %v1711
          %v1770 = vpack.c.b16 %v1714, %v1712
          %v1771 = vpack.c.b16 %v1717, %v1715
          %v1772 = vpack.c.b16 %v1718, %v1716
          %v1773 = vpack.c.b16 %v1721, %v1719
          %v1774 = vpack.c.b16 %v1722, %v1720
          %v1775 = vpack.c.b16 %v1725, %v1723
          %v1776 = vpack.c.b16 %v1726, %v1724
          %v1777 = vpack.c.b16 %v1729, %v1727
          %v1778 = vpack.c.b16 %v1730, %v1728
          %v1779 = vpack.c.b16 %v1733, %v1731
          %v1780 = vpack.c.b16 %v1734, %v1732
          %v1781 = vpack.c.b16 %v1737, %v1735
          %v1782 = vpack.c.b16 %v1738, %v1736
          %v1783 = vpack.c.b16 %v1741, %v1739
          %v1784 = vpack.c.b16 %v1742, %v1740
          %v1785 = vpack.c.b16 %v1745, %v1743
          %v1786 = vpack.c.b16 %v1746, %v1744
          %v1787 = vpack.c.b16 %v1749, %v1747
          %v1788 = vpack.c.b16 %v1750, %v1748
          %v1789 = vpack.c.b16 %v1753, %v1751
          %v1790 = vpack.c.b16 %v1754, %v1752
          %v1791 = vpack.c.b16 %v1757, %v1755
          %v1792 = vpack.c.b16 %v1758, %v1756
          %v1793 = vpack.c.b16 %v1761, %v1759
          %v1794 = vpack.c.b16 %v1762, %v1760
          %1827 = vmatprep.subr.bf16.mxu0 %v1778
          %1828 = vmatpush1.bf16.msra.mxu0 %v1777
          %1829 = vmatprep.subr.bf16.mxu0 %v1776
          %1830 = vmatpush1.bf16.msra.mxu0 %v1775
          %1831 = vmatprep.subr.bf16.mxu0 %v1774
          %1832 = vmatpush1.bf16.msra.mxu0 %v1773
          %1833 = vmatprep.subr.bf16.mxu0 %v1772
          %1834 = vmatpush1.bf16.msra.mxu0 %v1771
          %1835 = vmatprep.subr.bf16.mxu0 %v1770
          %1836 = vmatpush1.bf16.msra.mxu0 %v1769
          %1837 = vmatprep.subr.bf16.mxu0 %v1768
          %1838 = vmatpush1.bf16.msra.mxu0 %v1767
          %1839 = vmatprep.subr.bf16.mxu0 %v1766
          %1840 = vmatpush1.bf16.msra.mxu0 %v1765
          %1841 = vmatprep.subr.bf16.mxu0 %v1764
          %1842 = vmatpush1.bf16.msra.mxu0 %v1763
          %1843 = vmatprep.subr.bf16.mxu0 %v1794
          %1844 = vmatpush2.bf16.msra.mxu0 %v1793
          %1845 = vmatprep.subr.bf16.mxu0 %v1792
          %1846 = vmatpush2.bf16.msra.mxu0 %v1791
          %1847 = vmatprep.subr.bf16.mxu0 %v1790
          %1848 = vmatpush2.bf16.msra.mxu0 %v1789
          %1849 = vmatprep.subr.bf16.mxu0 %v1788
          %1850 = vmatpush2.bf16.msra.mxu0 %v1787
          %1851 = vmatprep.subr.bf16.mxu0 %v1786
          %1852 = vmatpush2.bf16.msra.mxu0 %v1785
          %1853 = vmatprep.subr.bf16.mxu0 %v1784
          %1854 = vmatpush2.bf16.msra.mxu0 %v1783
          %1855 = vmatprep.subr.bf16.mxu0 %v1782
          %1856 = vmatpush2.bf16.msra.mxu0 %v1781
          %1857 = vmatprep.subr.bf16.mxu0 %v1780
          %1858 = vmatpush2.bf16.msra.mxu0 %v1779
          %1859 = vmatprep.mubr.bf16.mxu0 %v1658
          %1860 = vmatmul.mubr.bf16.gmra.mxu0 %v1657
          %v1861 = vpop.f32.mrf.mxu0
          %v1862 = vadd.f32 %v1662, %v1861
          %v1863 = vpop.f32.mrf.mxu0
          %v1864 = vadd.f32 %v1666, %v1863
          %v1865 = vpop.f32.mrf.mxu0
          %v1866 = vadd.f32 %v1662, %v1865
          %v1867 = vpop.f32.mrf.mxu0
          %v1868 = vadd.f32 %v1666, %v1867
          %1869 = vdwg.mxu0
          %v1870 = vmul.f32 %v1620, %v1862
          %v1871 = vmul.f32 %v1621, %v1864
          %v1872 = vmul.f32 %v1622, %v1866
          %v1873 = vmul.f32 %v1623, %v1868
          %v1874 = vld [vmem:[#allocation9] sm:$0xf]
          %v1875 = vld [vmem:[#allocation9 + $0x4] sm:$0xf]
          %v1876 = vld [vmem:[#allocation9 + $0x8] sm:$0xf]
          %v1877 = vld [vmem:[#allocation9 + $0xc] sm:$0xf]
          %v1878 = vld [vmem:[#allocation9 + $0x10] sm:$0xf]
          %v1879 = vld [vmem:[#allocation9 + $0x14] sm:$0xf]
          %v1880 = vld [vmem:[#allocation9 + $0x18] sm:$0xf]
          %v1881 = vld [vmem:[#allocation9 + $0x1c] sm:$0xf]
          %v1882 = vld [vmem:[#allocation9 + $0x20] sm:$0xf]
          %v1883 = vld [vmem:[#allocation9 + $0x24] sm:$0xf]
          %v1884 = vld [vmem:[#allocation9 + $0x28] sm:$0xf]
          %v1885 = vld [vmem:[#allocation9 + $0x2c] sm:$0xf]
          %v1886 = vld [vmem:[#allocation9 + $0x30] sm:$0xf]
          %v1887 = vld [vmem:[#allocation9 + $0x34] sm:$0xf]
          %v1888 = vld [vmem:[#allocation9 + $0x38] sm:$0xf]
          %v1889 = vld [vmem:[#allocation9 + $0x3c] sm:$0xf]
          %v1890 = vld [vmem:[#allocation9 + $0x40] sm:$0xf]
          %v1891 = vld [vmem:[#allocation9 + $0x44] sm:$0xf]
          %v1892 = vld [vmem:[#allocation9 + $0x48] sm:$0xf]
          %v1893 = vld [vmem:[#allocation9 + $0x4c] sm:$0xf]
          %v1894 = vld [vmem:[#allocation9 + $0x50] sm:$0xf]
          %v1895 = vld [vmem:[#allocation9 + $0x54] sm:$0xf]
          %v1896 = vld [vmem:[#allocation9 + $0x58] sm:$0xf]
          %v1897 = vld [vmem:[#allocation9 + $0x5c] sm:$0xf]
          %v1898 = vld [vmem:[#allocation9 + $0x60] sm:$0xf]
          %v1899 = vld [vmem:[#allocation9 + $0x64] sm:$0xf]
          %v1900 = vld [vmem:[#allocation9 + $0x68] sm:$0xf]
          %v1901 = vld [vmem:[#allocation9 + $0x6c] sm:$0xf]
          %v1902 = vld [vmem:[#allocation9 + $0x70] sm:$0xf]
          %v1903 = vld [vmem:[#allocation9 + $0x74] sm:$0xf]
          %v1904 = vld [vmem:[#allocation9 + $0x78] sm:$0xf]
          %v1905 = vld [vmem:[#allocation9 + $0x7c] sm:$0xf]
          %v1906 = vpack.c.bf16 %v1872, %v1870
          %v1907 = vpack.c.bf16 %v1873, %v1871
          %v1908 = vlaneseq
          %v1909 = vshrl.u32 %v1908, 7
          %v1910 = vsub.s32 6, %v1909
          %v1911 = vrot.slane %v587, %v1910
          %v1944 = vunpack.c.l.b16 %v1874
          %v1945 = vunpack.c.l.b16 %v1875
          %v1946 = vunpack.c.l.b16 %v1876
          %v1947 = vunpack.c.l.b16 %v1877
          %v1948 = vunpack.c.l.b16 %v1878
          %v1949 = vunpack.c.l.b16 %v1879
          %v1950 = vunpack.c.l.b16 %v1880
          %v1951 = vunpack.c.l.b16 %v1881
          %v1952 = vunpack.c.l.b16 %v1882
          %v1953 = vunpack.c.l.b16 %v1883
          %v1954 = vunpack.c.l.b16 %v1884
          %v1955 = vunpack.c.l.b16 %v1885
          %v1956 = vunpack.c.l.b16 %v1886
          %v1957 = vunpack.c.l.b16 %v1887
          %v1958 = vunpack.c.l.b16 %v1888
          %v1959 = vunpack.c.l.b16 %v1889
          %v1960 = vunpack.c.l.b16 %v1890
          %v1961 = vunpack.c.l.b16 %v1891
          %v1962 = vunpack.c.l.b16 %v1892
          %v1963 = vunpack.c.l.b16 %v1893
          %v1964 = vunpack.c.l.b16 %v1894
          %v1965 = vunpack.c.l.b16 %v1895
          %v1966 = vunpack.c.l.b16 %v1896
          %v1967 = vunpack.c.l.b16 %v1897
          %v1968 = vunpack.c.l.b16 %v1898
          %v1969 = vunpack.c.l.b16 %v1899
          %v1970 = vunpack.c.l.b16 %v1900
          %v1971 = vunpack.c.l.b16 %v1901
          %v1972 = vunpack.c.l.b16 %v1902
          %v1973 = vunpack.c.l.b16 %v1903
          %v1974 = vunpack.c.l.b16 %v1904
          %v1975 = vunpack.c.l.b16 %v1905
          %v1976 = vpack.c.b16 %v1945, %v1944
          %v1977 = vpack.c.b16 %v1947, %v1946
          %v1978 = vpack.c.b16 %v1949, %v1948
          %v1979 = vpack.c.b16 %v1951, %v1950
          %v1980 = vpack.c.b16 %v1953, %v1952
          %v1981 = vpack.c.b16 %v1955, %v1954
          %v1982 = vpack.c.b16 %v1957, %v1956
          %v1983 = vpack.c.b16 %v1959, %v1958
          %v1984 = vpack.c.b16 %v1961, %v1960
          %v1985 = vpack.c.b16 %v1963, %v1962
          %v1986 = vpack.c.b16 %v1965, %v1964
          %v1987 = vpack.c.b16 %v1967, %v1966
          %v1988 = vpack.c.b16 %v1969, %v1968
          %v1989 = vpack.c.b16 %v1971, %v1970
          %v1990 = vpack.c.b16 %v1973, %v1972
          %v1991 = vpack.c.b16 %v1975, %v1974
          %2008 = vmatprep.subr.bf16.mxu0 0
          %2009 = vmatpush1.bf16.msra.mxu0 %v1983
          %2010 = vmatprep.subr.bf16.mxu0 0
          %2011 = vmatpush1.bf16.msra.mxu0 %v1982
          %2012 = vmatprep.subr.bf16.mxu0 0
          %2013 = vmatpush1.bf16.msra.mxu0 %v1981
          %2014 = vmatprep.subr.bf16.mxu0 0
          %2015 = vmatpush1.bf16.msra.mxu0 %v1980
          %2016 = vmatprep.subr.bf16.mxu0 0
          %2017 = vmatpush1.bf16.msra.mxu0 %v1979
          %2018 = vmatprep.subr.bf16.mxu0 0
          %2019 = vmatpush1.bf16.msra.mxu0 %v1978
          %2020 = vmatprep.subr.bf16.mxu0 0
          %2021 = vmatpush1.bf16.msra.mxu0 %v1977
          %2022 = vmatprep.subr.bf16.mxu0 0
          %2023 = vmatpush1.bf16.msra.mxu0 %v1976
          %2024 = vmatprep.subr.bf16.mxu0 0
          %2025 = vmatpush2.bf16.msra.mxu0 %v1991
          %2026 = vmatprep.subr.bf16.mxu0 0
          %2027 = vmatpush2.bf16.msra.mxu0 %v1990
          %2028 = vmatprep.subr.bf16.mxu0 0
          %2029 = vmatpush2.bf16.msra.mxu0 %v1989
          %2030 = vmatprep.subr.bf16.mxu0 0
          %2031 = vmatpush2.bf16.msra.mxu0 %v1988
          %2032 = vmatprep.subr.bf16.mxu0 0
          %2033 = vmatpush2.bf16.msra.mxu0 %v1987
          %2034 = vmatprep.subr.bf16.mxu0 0
          %2035 = vmatpush2.bf16.msra.mxu0 %v1986
          %2036 = vmatprep.subr.bf16.mxu0 0
          %2037 = vmatpush2.bf16.msra.mxu0 %v1985
          %2038 = vmatprep.subr.bf16.mxu0 0
          %2039 = vmatpush2.bf16.msra.mxu0 %v1984
          %2040 = vmatprep.mubr.bf16.mxu0 %v1907
          %2041 = vmatmul.mubr.bf16.gmra.mxu0 %v1906
          %v2042 = vpop.f32.mrf.mxu0
          %v2043 = vadd.f32 %v1911, %v2042
          %v2044 = vpop.f32.mrf.mxu0
          %v2045 = vpop.f32.mrf.mxu0
          %v2046 = vadd.f32 %v1911, %v2045
          %v2047 = vpop.f32.mrf.mxu0
          %2048 = vdwg.mxu0
          %2049 = vst [vmem:[#allocation12] sm:$0xff] %v2043
          %2050 = vst [vmem:[#allocation12 + $0x8] sm:$0xff] %v2046
        $region68: #{tpu_custom_call.1} parent=39 // pred_fallthru
          _
        // Predicated region
        $region69: #{tpu_custom_call.1} parent=39 // pred_check
          %p2051 = pneg %p152
        $region70: #{tpu_custom_call.1} parent=39 // pred_check_branch
          %2053 = sbr.rel (%p2051) target = $region72
        $region71: #{tpu_custom_call.1} parent=39 // pred_region
          %s2055 = ssub.s32 256, 256
          %2056 = vsyncadd [#allocation5], %s2055
          %s2057 = sshll.u32 [#allocation12], 4
          %s2058 = int_to_ptr.vmem [resolvable:$true] %s2057
          %2063 = dma.vmem_to_hbm [thread:$0]  %s2058, 256, %s5, [#allocation5], 128, 128, 8
        $region72: #{tpu_custom_call.1} parent=39 // pred_fallthru
          _
        // Predicated region
        $region73: #{tpu_custom_call.1} parent=39 // pred_check
          %p2064 = pneg %p152
        $region74: #{tpu_custom_call.1} parent=39 // pred_check_branch
          %2066 = sbr.rel (%p2064) target = $region76
        $region75: #{tpu_custom_call.1} parent=39 // pred_region
          %2067 = dma.done [#allocation5], 256
        $region76: #{tpu_custom_call.1} parent=39 // pred_fallthru
          _
      $region40: #{tpu_custom_call.1} parent=5 // pred_fallthru
        _
      %p2068 = scmp.le.s32.totalorder 2, %s19
      // Predicated region
      $region77: #{tpu_custom_call.1} parent=5 // pred_check
        %p2069 = pneg %p2068
      $region78: #{tpu_custom_call.1} parent=5 // pred_check_branch
        %2071 = sbr.rel (%p2069) target = $region80
      $region79: #{tpu_custom_call.1} parent=5 // pred_region
        %s2072 = ssub.s32 %s19, 2
      $region80: #{tpu_custom_call.1} parent=5 // pred_fallthru
        _
    $region6: #{tpu_custom_call.1} parent=1 // loop_footer
      %s23 = sadd.s32 1, %s19
    $region7: #{tpu_custom_call.1} parent=1 // loop_footer_branch
      %18 = sbr.rel target = $region3
    $region8: #{tpu_custom_call.1} parent=1 // loop_exit
      _
    %2073 = vsyncpa [#allocation4], 1
    %s2074 = scalar_lea.sflag [#allocation4], 1
    %2075 = vsyncpa %s2074, 1
    %2076 = vsyncpa [#allocation7], 1
    %s2077 = scalar_lea.sflag [#allocation7], 1
    %2078 = vsyncpa %s2077, 1
    %2079 = vsyncpa [#allocation10], 1
    %2080 = vsyncpa [#allocation5], 1
    %s2081 = scalar_lea.sflag [#allocation5], 1
    %2082 = vsyncpa %s2081, 1

</llo_original>
